<compile_context>
chip_gen: v6e
topology: v6e:2x2x1
jax: 0.10.0
libtpu: 0.0.40
codegen_flags: <defaults>
</compile_context>

<pallas_src>
import functools

import jax
import jax.numpy as jnp
from jax import lax
from jax.experimental import pallas as pl
from jax.experimental.pallas import tpu as pltpu


def _vmem_budget_bytes():
    """Per-generation scoped-VMEM budget (~75% of physical capacity)."""
    try:
        cap = getattr(pltpu.get_tpu_info(), "vmem_capacity_bytes", None)
        if cap:
            return int(cap) * 3 // 4
    except Exception:
        pass
    # Conservative default: fits v7x's 64 MiB physical VMEM (v5e/v6e have 128).
    return 48 * 1024 * 1024


# ---------------------------------------------------------------------------
# Kernel 1: row-tiled feature transform.
#   XW[i] = d_inv_sqrt[i] * (X[i] @ W), emitted as bf16 for the MXU.
# ---------------------------------------------------------------------------
def _xw_kernel(x_ref, w_ref, d_ref, xw_ref):
    xw = jnp.dot(x_ref[...], w_ref[...], preferred_element_type=jnp.float32)
    xw_ref[...] = (d_ref[...] * xw).astype(xw_ref.dtype)


# ---------------------------------------------------------------------------
# Kernel 2a (primary, "row strip"): one grid step per row tile.
#   acc  = A[i,:] @ XW            (full bf16 A strip, XW VMEM-resident)
#   acc += XW[rows of tile i]     (+I self loop folded in-kernel)
#   H[i] = relu(d[i] * acc + b);  psum[i] = column-sum of tile H[i]
# ---------------------------------------------------------------------------
def _aggregate_strip_kernel(a_ref, xw_ref, d_ref, b_ref, node_ref, psum_ref):
    i = pl.program_id(0)
    tm = node_ref.shape[0]
    acc = jnp.dot(a_ref[...], xw_ref[...], preferred_element_type=jnp.float32)
    row_off = pl.multiple_of(i * tm, tm)
    acc = acc + xw_ref[pl.ds(row_off, tm), :].astype(jnp.float32)
    h = jnp.maximum(d_ref[...] * acc + b_ref[...], 0.0)
    node_ref[...] = h.astype(node_ref.dtype)
    psum_ref[...] = jnp.sum(h, axis=0)[None, None, :].astype(psum_ref.dtype)


# ---------------------------------------------------------------------------
# Kernel 2b (fallback, k-tiled, tm == tk): accumulate directly into the
# VMEM-resident node output (constant block index across k), +I folded on the
# diagonal k step, bias+relu+pool-partial finalized on the last k step.
# ---------------------------------------------------------------------------
def _aggregate_ktiled_kernel(a_ref, xw_ref, d_ref, b_ref, node_ref, psum_ref):
    i = pl.program_id(0)
    k = pl.program_id(1)

    @pl.when(k == 0)
    def _init():
        node_ref[...] = jnp.zeros_like(node_ref)

    node_ref[...] += jnp.dot(a_ref[...], xw_ref[...],
                             preferred_element_type=jnp.float32)

    @pl.when(k == i)  # +I self loop (exact: tm == tk, aligned tile boundaries)
    def _selfloop():
        node_ref[...] += xw_ref[...].astype(jnp.float32)

    @pl.when(k == pl.num_programs(1) - 1)
    def _finalize():
        h = jnp.maximum(d_ref[...] * node_ref[...] + b_ref[...], 0.0)
        node_ref[...] = h
        psum_ref[...] = jnp.sum(h, axis=0)[None, None, :].astype(psum_ref.dtype)


def gnn_encode(adj, x, w, b, *, tm=256, tm_xw=512, force_k_tiled=False):
    """GCN encoder forward.

    adj: [N, N] unnormalized (0/1) adjacency (no self loops required),
    x: [N, F], w: [F, H], b: [1, H].
    Returns (node_emb [N, H] f32, graph_emb [1, H] f32).
    """
    n, f_in = x.shape
    hidden = w.shape[1]

    big, small = max(tm, tm_xw), min(tm, tm_xw)
    assert big % small == 0, "tm and tm_xw must nest (one a multiple of the other)"
    n_pad = pl.cdiv(n, big) * big
    pad_n = n_pad - n

    # --- plain-JAX glue (no O(N^2) f32 materializations) --------------------
    deg = jnp.sum(adj.astype(jnp.float32), axis=1) + 1.0          # deg of A+I
    d_inv_sqrt = (1.0 / jnp.sqrt(deg))[:, None]                   # [N, 1]
    d_pad = jnp.pad(d_inv_sqrt, ((0, pad_n), (0, 0)))             # pad rows -> 0

    a_pad = jnp.pad(adj.astype(jnp.bfloat16), ((0, pad_n), (0, pad_n)))
    x_pad = jnp.pad(x.astype(jnp.bfloat16), ((0, pad_n), (0, 0)))
    w_bf16 = w.astype(jnp.bfloat16)
    b_f32 = b.astype(jnp.float32)

    vmem_budget = _vmem_budget_bytes()

    # --- kernel 1: XW = d^-1/2 * (X @ W), large row tiles --------------------
    tmx = min(tm_xw, n_pad)
    xw = pl.pallas_call(
        _xw_kernel,
        out_shape=jax.ShapeDtypeStruct((n_pad, hidden), jnp.bfloat16),
        grid_spec=pltpu.PrefetchScalarGridSpec(
            num_scalar_prefetch=0,
            grid=(n_pad // tmx,),
            in_specs=[
                pl.BlockSpec((tmx, f_in), lambda i: (i, 0)),
                pl.BlockSpec((f_in, hidden), lambda i: (0, 0)),
                pl.BlockSpec((tmx, 1), lambda i: (i, 0)),
            ],
            out_specs=pl.BlockSpec((tmx, hidden), lambda i: (i, 0)),
        ),
        compiler_params=pltpu.CompilerParams(
            dimension_semantics=("parallel",),
            vmem_limit_bytes=vmem_budget,
        ),
        cost_estimate=pl.CostEstimate(
            flops=2 * n_pad * f_in * hidden,
            transcendentals=0,
            bytes_accessed=(n_pad * f_in * 2 + f_in * hidden * 2
                            + n_pad * hidden * 2 + n_pad * 4),
        ),
    )(x_pad, w_bf16, d_pad)

    # --- kernel 2: aggregation (A+I) @ XW + bias + relu + pool partials ------
    tmr = min(tm, n_pad)
    n_row = n_pad // tmr

    # Double-buffered VMEM need of the row-strip formulation.
    strip_bytes = (2 * tmr * n_pad * 2          # A strip (bf16)
                   + 2 * n_pad * hidden * 2     # resident XW (bf16)
                   + 2 * tmr * hidden * 4       # node out (f32)
                   + 2 * (tmr * 4 + 2 * hidden * 4))
    use_strip = (not force_k_tiled) and strip_bytes <= vmem_budget

    out_shape = (
        jax.ShapeDtypeStruct((n_pad, hidden), jnp.float32),
        jax.ShapeDtypeStruct((n_row, 1, hidden), jnp.float32),
    )

    if use_strip:
        node_pad, psum = pl.pallas_call(
            _aggregate_strip_kernel,
            out_shape=out_shape,
            grid_spec=pltpu.PrefetchScalarGridSpec(
                num_scalar_prefetch=0,
                grid=(n_row,),
                in_specs=[
                    pl.BlockSpec((tmr, n_pad), lambda i: (i, 0)),     # A strip
                    pl.BlockSpec((n_pad, hidden), lambda i: (0, 0)),  # XW resident
                    pl.BlockSpec((tmr, 1), lambda i: (i, 0)),         # row scale
                    pl.BlockSpec((1, hidden), lambda i: (0, 0)),      # bias
                ],
                out_specs=(
                    pl.BlockSpec((tmr, hidden), lambda i: (i, 0)),
                    pl.BlockSpec((1, 1, hidden), lambda i: (i, 0, 0)),
                ),
            ),
            compiler_params=pltpu.CompilerParams(
                dimension_semantics=("parallel",),
                vmem_limit_bytes=vmem_budget,
            ),
            cost_estimate=pl.CostEstimate(
                flops=2 * n_pad * n_pad * hidden + n_pad * hidden,
                transcendentals=0,
                bytes_accessed=(n_pad * n_pad * 2          # A (bf16)
                                + n_pad * hidden * 2       # XW, read once
                                + n_pad * hidden * 4       # node out
                                + n_pad * 4 + n_row * hidden * 4),
            ),
        )(a_pad, xw, d_pad, b_f32)
    else:
        tk = tmr  # tm == tk so the in-kernel +I fold is exact
        node_pad, psum = pl.pallas_call(
            _aggregate_ktiled_kernel,
            out_shape=out_shape,
            grid_spec=pltpu.PrefetchScalarGridSpec(
                num_scalar_prefetch=0,
                grid=(n_row, n_pad // tk),
                in_specs=[
                    pl.BlockSpec((tmr, tk), lambda i, k: (i, k)),      # A tile
                    pl.BlockSpec((tk, hidden), lambda i, k: (k, 0)),   # XW tile
                    pl.BlockSpec((tmr, 1), lambda i, k: (i, 0)),       # row scale
                    pl.BlockSpec((1, hidden), lambda i, k: (0, 0)),    # bias
                ],
                out_specs=(
                    pl.BlockSpec((tmr, hidden), lambda i, k: (i, 0)),
                    pl.BlockSpec((1, 1, hidden), lambda i, k: (i, 0, 0)),
                ),
            ),
            compiler_params=pltpu.CompilerParams(
                dimension_semantics=("parallel", "arbitrary"),
                vmem_limit_bytes=vmem_budget,
            ),
            cost_estimate=pl.CostEstimate(
                flops=2 * n_pad * n_pad * hidden + n_pad * hidden,
                transcendentals=0,
                bytes_accessed=(n_pad * n_pad * 2
                                + n_row * n_pad * hidden * 2   # XW re-streamed/row tile
                                + n_pad * hidden * 4
                                + n_pad * 4 + n_row * hidden * 4),
            ),
        )(a_pad, xw, d_pad, b_f32)

    node_emb = node_pad[:n]
    # Mean-pool finalize: padded rows (zero A row, zero row scale, zero XW row)
    # each contributed relu(b) to the partial sums -> subtract, then divide by N.
    total = jnp.sum(psum.reshape(n_row, hidden), axis=0, keepdims=True)
    total = total - pad_n * jnp.maximum(b_f32, 0.0)
    graph_emb = total / n
    return node_emb, graph_emb


def get_out_dim(w):
    return w.shape[1]


if __name__ == "__main__":
    key = jax.random.PRNGKey(0)
    k_adj, k_x, k_w, k_b = jax.random.split(key, 4)

    # Lane-dense feature dims (multiples of 128); N intentionally not a tile
    # multiple so the padding path is exercised.
    N, F_IN, HIDDEN = 200, 128, 128

    # Deterministic synthetic graph: random symmetric {0,1} adjacency.
    a_raw = (jax.random.uniform(k_adj, (N, N)) < 0.05).astype(jnp.float32)
    adj = jnp.maximum(a_raw, a_raw.T)
    adj = adj * (1.0 - jnp.eye(N, dtype=jnp.float32))   # self loops folded in-kernel

    x = jax.random.normal(k_x, (N, F_IN), dtype=jnp.float32)
    w = jax.random.normal(k_w, (F_IN, HIDDEN), dtype=jnp.float32) / jnp.sqrt(F_IN)
    b = jax.random.normal(k_b, (1, HIDDEN), dtype=jnp.float32) * 0.01

    # Primary path: row-strip aggregation with VMEM-resident XW.
    node_emb, graph_emb = jax.jit(gnn_encode)(adj, x, w, b)
    jax.block_until_ready((node_emb, graph_emb))

    # Also exercise the k-tiled fallback (small tiles force a multi-step k loop).
    ktiled = jax.jit(functools.partial(gnn_encode, tm=128, tm_xw=128,
                                       force_k_tiled=True))
    node_kt, graph_kt = ktiled(adj, x, w, b)
    jax.block_until_ready((node_kt, graph_kt))

    # Reference in plain JAX, replicating the kernel's bf16 quantization points.
    deg = jnp.sum(adj, axis=1) + 1.0
    d = 1.0 / jnp.sqrt(deg)
    x_q = x.astype(jnp.bfloat16).astype(jnp.float32)
    w_q = w.astype(jnp.bfloat16).astype(jnp.float32)
    xw_q = jnp.dot(x_q, w_q, precision=lax.Precision.HIGHEST)
    xw_s = (d[:, None] * xw_q).astype(jnp.bfloat16).astype(jnp.float32)
    a_q = adj.astype(jnp.bfloat16).astype(jnp.float32)
    agg = jnp.dot(a_q, xw_s, precision=lax.Precision.HIGHEST) + xw_s   # (A+I) @ XW
    ref_nodes = jnp.maximum(d[:, None] * agg + b, 0.0)
    ref_graph = jnp.mean(ref_nodes, axis=0, keepdims=True)

    assert node_emb.shape == (N, HIDDEN) and graph_emb.shape == (1, HIDDEN)
    assert jnp.allclose(node_emb, ref_nodes, atol=2e-2, rtol=2e-2)
    assert jnp.allclose(graph_emb, ref_graph, atol=2e-2, rtol=2e-2)
    assert jnp.allclose(node_kt, ref_nodes, atol=2e-2, rtol=2e-2)
    assert jnp.allclose(graph_kt, ref_graph, atol=2e-2, rtol=2e-2)
    assert get_out_dim(w) == HIDDEN

    print("KERNEL_OK")
</pallas_src>

<mosaic_0001>
module attributes {stable_mosaic.version = 11 : i64} {
  func.func @_xw_kernel(%arg0: i32, %arg1: memref<512x128xbf16, #tpu.memory_space<vmem>>, %arg2: memref<128x128xbf16, #tpu.memory_space<vmem>>, %arg3: memref<512x1xf32, #tpu.memory_space<vmem>>, %arg4: memref<512x128xbf16, #tpu.memory_space<vmem>>) attributes {dimension_semantics = [#tpu.dimension_semantics<parallel>], iteration_bounds = array<i64: 1>, scalar_prefetch = 0 : i64, scratch_operands = 0 : i64, tpu.core_type = #tpu.core_type<tc>, window_params = [{transform_indices = @transform_0, window_bounds = array<i64: 512, 128>}, {pipeline_mode = #tpu.pipeline_mode<synchronous>, transform_indices = @transform_1, window_bounds = array<i64: 128, 128>}, {transform_indices = @transform_2, window_bounds = array<i64: 512, 1>}, {transform_indices = @transform_3, window_bounds = array<i64: 512, 128>}]} {
    %c0 = arith.constant 0 : index
    %c0_0 = arith.constant 0 : index
    %0 = vector.load %arg1[%c0, %c0_0] : memref<512x128xbf16, #tpu.memory_space<vmem>>, vector<512x128xbf16>
    %c0_1 = arith.constant 0 : index
    %c0_2 = arith.constant 0 : index
    %1 = vector.load %arg2[%c0_1, %c0_2] : memref<128x128xbf16, #tpu.memory_space<vmem>>, vector<128x128xbf16>
    %cst = arith.constant dense<0.000000e+00> : vector<512x128xf32>
    %2 = tpu.matmul %0, %1, %cst {dimension_numbers = #tpu.dot_dimension_numbers<[1], [0], [0], [1], [0, 0, 1, 1], [], []>} : vector<512x128xbf16>, vector<128x128xbf16>, vector<512x128xf32> -> vector<512x128xf32>
    %c0_3 = arith.constant 0 : index
    %c0_4 = arith.constant 0 : index
    %3 = vector.load %arg3[%c0_3, %c0_4] : memref<512x1xf32, #tpu.memory_space<vmem>>, vector<512x1xf32>
    %4 = vector.broadcast %3 : vector<512x1xf32> to vector<512x128xf32>
    %5 = arith.mulf %4, %2 : vector<512x128xf32>
    %6 = arith.truncf %5 : vector<512x128xf32> to vector<512x128xbf16>
    %c0_5 = arith.constant 0 : index
    %c0_6 = arith.constant 0 : index
    %7 = vector.load %arg4[%c0_5, %c0_6] : memref<512x128xbf16, #tpu.memory_space<vmem>>, vector<512x128xbf16>
    tpu.vector_store %arg4[%c0_5, %c0_6], %6 {strides = array<i32>} : memref<512x128xbf16, #tpu.memory_space<vmem>>, vector<512x128xbf16>,
    return
  }
  func.func @transform_0(%arg0: i32) -> (i32, i32) {
    %c0_i32 = arith.constant 0 : i32
    %c0_i32_0 = arith.constant 0 : i32
    return %arg0, %c0_i32 : i32, i32
  }
  func.func @transform_1(%arg0: i32) -> (i32, i32) {
    %c0_i32 = arith.constant 0 : i32
    %c0_i32_0 = arith.constant 0 : i32
    %c0_i32_1 = arith.constant 0 : i32
    return %c0_i32, %c0_i32_0 : i32, i32
  }
  func.func @transform_2(%arg0: i32) -> (i32, i32) {
    %c0_i32 = arith.constant 0 : i32
    %c0_i32_0 = arith.constant 0 : i32
    return %arg0, %c0_i32 : i32, i32
  }
  func.func @transform_3(%arg0: i32) -> (i32, i32) {
    %c0_i32 = arith.constant 0 : i32
    %c0_i32_0 = arith.constant 0 : i32
    return %arg0, %c0_i32 : i32, i32
  }
}

module attributes {stable_mosaic.version = 11 : i64} {
  func.func @_aggregate_strip_kernel(%arg0: i32, %arg1: memref<256x512xbf16, #tpu.memory_space<vmem>>, %arg2: memref<512x128xbf16, #tpu.memory_space<vmem>>, %arg3: memref<256x1xf32, #tpu.memory_space<vmem>>, %arg4: memref<1x128xf32, #tpu.memory_space<vmem>>, %arg5: memref<256x128xf32, #tpu.memory_space<vmem>>, %arg6: memref<1x1x128xf32, #tpu.memory_space<vmem>>) attributes {dimension_semantics = [#tpu.dimension_semantics<parallel>], iteration_bounds = array<i64: 2>, scalar_prefetch = 0 : i64, scratch_operands = 0 : i64, tpu.core_type = #tpu.core_type<tc>, window_params = [{transform_indices = @transform_0, window_bounds = array<i64: 256, 512>}, {pipeline_mode = #tpu.pipeline_mode<synchronous>, transform_indices = @transform_1, window_bounds = array<i64: 512, 128>}, {transform_indices = @transform_2, window_bounds = array<i64: 256, 1>}, {pipeline_mode = #tpu.pipeline_mode<synchronous>, transform_indices = @transform_3, window_bounds = array<i64: 1, 128>}, {transform_indices = @transform_4, window_bounds = array<i64: 256, 128>}, {transform_indices = @transform_5, window_bounds = array<i64: 1, 1, 128>}]} {
    %c0 = arith.constant 0 : index
    %c0_0 = arith.constant 0 : index
    %0 = vector.load %arg1[%c0, %c0_0] : memref<256x512xbf16, #tpu.memory_space<vmem>>, vector<256x512xbf16>
    %c0_1 = arith.constant 0 : index
    %c0_2 = arith.constant 0 : index
    %1 = vector.load %arg2[%c0_1, %c0_2] : memref<512x128xbf16, #tpu.memory_space<vmem>>, vector<512x128xbf16>
    %cst = arith.constant dense<0.000000e+00> : vector<256x128xf32>
    %2 = tpu.matmul %0, %1, %cst {dimension_numbers = #tpu.dot_dimension_numbers<[1], [0], [0], [1], [0, 0, 1, 1], [], []>} : vector<256x512xbf16>, vector<512x128xbf16>, vector<256x128xf32> -> vector<256x128xf32>
    %c256_i32 = arith.constant 256 : i32
    %3 = arith.muli %arg0, %c256_i32 : i32
    %4 = tpu.assume_multiple %3, 256 : i32
    %5 = arith.index_cast %4 : i32 to index
    %c0_3 = arith.constant 0 : index
    %6 = vector.load %arg2[%5, %c0_3] : memref<512x128xbf16, #tpu.memory_space<vmem>>, vector<256x128xbf16>
    %7 = arith.extf %6 : vector<256x128xbf16> to vector<256x128xf32>
    %8 = arith.addf %2, %7 : vector<256x128xf32>
    %c0_4 = arith.constant 0 : index
    %c0_5 = arith.constant 0 : index
    %9 = vector.load %arg3[%c0_4, %c0_5] : memref<256x1xf32, #tpu.memory_space<vmem>>, vector<256x1xf32>
    %10 = vector.broadcast %9 : vector<256x1xf32> to vector<256x128xf32>
    %11 = arith.mulf %10, %8 : vector<256x128xf32>
    %c0_6 = arith.constant 0 : index
    %c0_7 = arith.constant 0 : index
    %12 = vector.load %arg4[%c0_6, %c0_7] : memref<1x128xf32, #tpu.memory_space<vmem>>, vector<1x128xf32>
    %13 = vector.broadcast %12 : vector<1x128xf32> to vector<256x128xf32>
    %14 = arith.addf %11, %13 : vector<256x128xf32>
    %cst_8 = arith.constant 0.000000e+00 : f32
    %15 = vector.broadcast %cst_8 : f32 to vector<256x128xf32>
    %16 = arith.maximumf %14, %15 : vector<256x128xf32>
    %c0_9 = arith.constant 0 : index
    %c0_10 = arith.constant 0 : index
    %17 = vector.load %arg5[%c0_9, %c0_10] : memref<256x128xf32, #tpu.memory_space<vmem>>, vector<256x128xf32>
    tpu.vector_store %arg5[%c0_9, %c0_10], %16 {strides = array<i32>} : memref<256x128xf32, #tpu.memory_space<vmem>>, vector<256x128xf32>,
    %cst_11 = arith.constant dense<0.000000e+00> : vector<128xf32>
    %18 = vector.multi_reduction <add>, %16, %cst_11 [0] : vector<256x128xf32> to vector<128xf32>
    %19 = vector.shape_cast %18 : vector<128xf32> to vector<1x1x128xf32>
    %c0_12 = arith.constant 0 : index
    %c0_13 = arith.constant 0 : index
    %c0_14 = arith.constant 0 : index
    %20 = vector.load %arg6[%c0_12, %c0_13, %c0_14] : memref<1x1x128xf32, #tpu.memory_space<vmem>>, vector<1x1x128xf32>
    tpu.vector_store %arg6[%c0_12, %c0_13, %c0_14], %19 {strides = array<i32>} : memref<1x1x128xf32, #tpu.memory_space<vmem>>, vector<1x1x128xf32>,
    return
  }
  func.func @transform_0(%arg0: i32) -> (i32, i32) {
    %c0_i32 = arith.constant 0 : i32
    %c0_i32_0 = arith.constant 0 : i32
    return %arg0, %c0_i32 : i32, i32
  }
  func.func @transform_1(%arg0: i32) -> (i32, i32) {
    %c0_i32 = arith.constant 0 : i32
    %c0_i32_0 = arith.constant 0 : i32
    %c0_i32_1 = arith.constant 0 : i32
    return %c0_i32, %c0_i32_0 : i32, i32
  }
  func.func @transform_2(%arg0: i32) -> (i32, i32) {
    %c0_i32 = arith.constant 0 : i32
    %c0_i32_0 = arith.constant 0 : i32
    return %arg0, %c0_i32 : i32, i32
  }
  func.func @transform_3(%arg0: i32) -> (i32, i32) {
    %c0_i32 = arith.constant 0 : i32
    %c0_i32_0 = arith.constant 0 : i32
    %c0_i32_1 = arith.constant 0 : i32
    return %c0_i32, %c0_i32_0 : i32, i32
  }
  func.func @transform_4(%arg0: i32) -> (i32, i32) {
    %c0_i32 = arith.constant 0 : i32
    %c0_i32_0 = arith.constant 0 : i32
    return %arg0, %c0_i32 : i32, i32
  }
  func.func @transform_5(%arg0: i32) -> (i32, i32, i32) {
    %c0_i32 = arith.constant 0 : i32
    %c0_i32_0 = arith.constant 0 : i32
    %c0_i32_1 = arith.constant 0 : i32
    return %arg0, %c0_i32, %c0_i32_0 : i32, i32, i32
  }
}

</mosaic_0001>

<llo_original>
// kernel: gnn_encode.2
$region0: #{gnn_encode.2}
  #allocation0 [shape = 'u32[]', space=smem, size = 0x4, offset = 0x4, fixed_abs, tag = 'smem constant byte address 0x4 - core index']
  #allocation1 [shape = 'u32[144,128]{1,0:T(1,128)}', space=vmem, size = 0x12000, scoped, tag = 'internal scratch']
  %s0 = inlined_call_operand.vmem [shape: bf16[512,128], index: 0, kind: input, shape index: {}]
  %s1 = inlined_call_operand.vmem [shape: bf16[128,128], index: 1, kind: input, shape index: {}]
  %s2 = inlined_call_operand.vmem [shape: f32[512,1], index: 2, kind: input, shape index: {}]
  %s3 = inlined_call_operand.vmem [shape: bf16[512,128], index: 3, kind: output, shape index: {}]
  %s4 = sld [smem:[#allocation0]]
  $region22: #{gnn_encode.2} parent=0
    _
  %s6 = ssub.s32 1, %s4
  %s7 = scalar_select 0, %s6, %s4
  // Predicated region
  $region2: #{gnn_encode.2} parent=0 // pred_check
    _
  $region3: #{gnn_encode.2} parent=0 // pred_check_branch
    %9 = sbr.rel (0) target = $region5
  $region4: #{gnn_encode.2} parent=0 // pred_region
    _
  $region5: #{gnn_encode.2} parent=0 // pred_fallthru
    _
  // Predicated region
  $region6: #{gnn_encode.2} parent=0 // pred_check
    _
  $region7: #{gnn_encode.2} parent=0 // pred_check_branch
    %11 = sbr.rel (0) target = $region9
  $region8: #{gnn_encode.2} parent=0 // pred_region
    _
  $region9: #{gnn_encode.2} parent=0 // pred_fallthru
    _
  // Predicated region
  $region10: #{gnn_encode.2} parent=0 // pred_check
    _
  $region11: #{gnn_encode.2} parent=0 // pred_check_branch
    %13 = sbr.rel (0) target = $region13
  $region12: #{gnn_encode.2} parent=0 // pred_region
    _
  $region13: #{gnn_encode.2} parent=0 // pred_fallthru
    _
  %v15 = vld [vmem:[%s0] sm:$0xf]
  %v16 = vld [vmem:[%s0 + $0x4] sm:$0xf]
  %v17 = vld [vmem:[%s0 + $0x8] sm:$0xf]
  %v18 = vld [vmem:[%s0 + $0xc] sm:$0xf]
  %v19 = vld [vmem:[%s0 + $0x10] sm:$0xf]
  %v20 = vld [vmem:[%s0 + $0x14] sm:$0xf]
  %v21 = vld [vmem:[%s0 + $0x18] sm:$0xf]
  %v22 = vld [vmem:[%s0 + $0x1c] sm:$0xf]
  %v23 = vld [vmem:[%s0 + $0x20] sm:$0xf]
  %v24 = vld [vmem:[%s0 + $0x24] sm:$0xf]
  %v25 = vld [vmem:[%s0 + $0x28] sm:$0xf]
  %v26 = vld [vmem:[%s0 + $0x2c] sm:$0xf]
  %v27 = vld [vmem:[%s0 + $0x30] sm:$0xf]
  %v28 = vld [vmem:[%s0 + $0x34] sm:$0xf]
  %v29 = vld [vmem:[%s0 + $0x38] sm:$0xf]
  %v30 = vld [vmem:[%s0 + $0x3c] sm:$0xf]
  %v31 = vld [vmem:[%s0 + $0x40] sm:$0xf]
  %v32 = vld [vmem:[%s0 + $0x44] sm:$0xf]
  %v33 = vld [vmem:[%s0 + $0x48] sm:$0xf]
  %v34 = vld [vmem:[%s0 + $0x4c] sm:$0xf]
  %v35 = vld [vmem:[%s0 + $0x50] sm:$0xf]
  %v36 = vld [vmem:[%s0 + $0x54] sm:$0xf]
  %v37 = vld [vmem:[%s0 + $0x58] sm:$0xf]
  %v38 = vld [vmem:[%s0 + $0x5c] sm:$0xf]
  %v39 = vld [vmem:[%s0 + $0x60] sm:$0xf]
  %v40 = vld [vmem:[%s0 + $0x64] sm:$0xf]
  %v41 = vld [vmem:[%s0 + $0x68] sm:$0xf]
  %v42 = vld [vmem:[%s0 + $0x6c] sm:$0xf]
  %v43 = vld [vmem:[%s0 + $0x70] sm:$0xf]
  %v44 = vld [vmem:[%s0 + $0x74] sm:$0xf]
  %v45 = vld [vmem:[%s0 + $0x78] sm:$0xf]
  %v46 = vld [vmem:[%s0 + $0x7c] sm:$0xf]
  %v47 = vld [vmem:[%s0 + $0x80] sm:$0xf]
  %v48 = vld [vmem:[%s0 + $0x84] sm:$0xf]
  %v49 = vld [vmem:[%s0 + $0x88] sm:$0xf]
  %v50 = vld [vmem:[%s0 + $0x8c] sm:$0xf]
  %v51 = vld [vmem:[%s0 + $0x90] sm:$0xf]
  %v52 = vld [vmem:[%s0 + $0x94] sm:$0xf]
  %v53 = vld [vmem:[%s0 + $0x98] sm:$0xf]
  %v54 = vld [vmem:[%s0 + $0x9c] sm:$0xf]
  %v55 = vld [vmem:[%s0 + $0xa0] sm:$0xf]
  %v56 = vld [vmem:[%s0 + $0xa4] sm:$0xf]
  %v57 = vld [vmem:[%s0 + $0xa8] sm:$0xf]
  %v58 = vld [vmem:[%s0 + $0xac] sm:$0xf]
  %v59 = vld [vmem:[%s0 + $0xb0] sm:$0xf]
  %v60 = vld [vmem:[%s0 + $0xb4] sm:$0xf]
  %v61 = vld [vmem:[%s0 + $0xb8] sm:$0xf]
  %v62 = vld [vmem:[%s0 + $0xbc] sm:$0xf]
  %v63 = vld [vmem:[%s0 + $0xc0] sm:$0xf]
  %v64 = vld [vmem:[%s0 + $0xc4] sm:$0xf]
  %v65 = vld [vmem:[%s0 + $0xc8] sm:$0xf]
  %v66 = vld [vmem:[%s0 + $0xcc] sm:$0xf]
  %v67 = vld [vmem:[%s0 + $0xd0] sm:$0xf]
  %v68 = vld [vmem:[%s0 + $0xd4] sm:$0xf]
  %v69 = vld [vmem:[%s0 + $0xd8] sm:$0xf]
  %v70 = vld [vmem:[%s0 + $0xdc] sm:$0xf]
  %v71 = vld [vmem:[%s0 + $0xe0] sm:$0xf]
  %v72 = vld [vmem:[%s0 + $0xe4] sm:$0xf]
  %v73 = vld [vmem:[%s0 + $0xe8] sm:$0xf]
  %v74 = vld [vmem:[%s0 + $0xec] sm:$0xf]
  %v75 = vld [vmem:[%s0 + $0xf0] sm:$0xf]
  %v76 = vld [vmem:[%s0 + $0xf4] sm:$0xf]
  %v77 = vld [vmem:[%s0 + $0xf8] sm:$0xf]
  %v78 = vld [vmem:[%s0 + $0xfc] sm:$0xf]
  %v79 = vld [vmem:[%s1] sm:$0xf]
  %v80 = vld [vmem:[%s1 + $0x4] sm:$0xf]
  %v81 = vld [vmem:[%s1 + $0x8] sm:$0xf]
  %v82 = vld [vmem:[%s1 + $0xc] sm:$0xf]
  %v83 = vld [vmem:[%s1 + $0x10] sm:$0xf]
  %v84 = vld [vmem:[%s1 + $0x14] sm:$0xf]
  %v85 = vld [vmem:[%s1 + $0x18] sm:$0xf]
  %v86 = vld [vmem:[%s1 + $0x1c] sm:$0xf]
  %v87 = vld [vmem:[%s1 + $0x20] sm:$0xf]
  %v88 = vld [vmem:[%s1 + $0x24] sm:$0xf]
  %v89 = vld [vmem:[%s1 + $0x28] sm:$0xf]
  %v90 = vld [vmem:[%s1 + $0x2c] sm:$0xf]
  %v91 = vld [vmem:[%s1 + $0x30] sm:$0xf]
  %v92 = vld [vmem:[%s1 + $0x34] sm:$0xf]
  %v93 = vld [vmem:[%s1 + $0x38] sm:$0xf]
  %v94 = vld [vmem:[%s1 + $0x3c] sm:$0xf]
  %v159 = vunpack.c.l.b16 %v15
  %v160 = vunpack.c.l.b16 %v16
  %v161 = vunpack.c.l.b16 %v17
  %v162 = vunpack.c.l.b16 %v18
  %v163 = vunpack.c.l.b16 %v19
  %v164 = vunpack.c.l.b16 %v20
  %v165 = vunpack.c.l.b16 %v21
  %v166 = vunpack.c.l.b16 %v22
  %v167 = vunpack.c.l.b16 %v23
  %v168 = vunpack.c.l.b16 %v24
  %v169 = vunpack.c.l.b16 %v25
  %v170 = vunpack.c.l.b16 %v26
  %v171 = vunpack.c.l.b16 %v27
  %v172 = vunpack.c.l.b16 %v28
  %v173 = vunpack.c.l.b16 %v29
  %v174 = vunpack.c.l.b16 %v30
  %v175 = vunpack.c.l.b16 %v31
  %v176 = vunpack.c.l.b16 %v32
  %v177 = vunpack.c.l.b16 %v33
  %v178 = vunpack.c.l.b16 %v34
  %v179 = vunpack.c.l.b16 %v35
  %v180 = vunpack.c.l.b16 %v36
  %v181 = vunpack.c.l.b16 %v37
  %v182 = vunpack.c.l.b16 %v38
  %v183 = vunpack.c.l.b16 %v39
  %v184 = vunpack.c.l.b16 %v40
  %v185 = vunpack.c.l.b16 %v41
  %v186 = vunpack.c.l.b16 %v42
  %v187 = vunpack.c.l.b16 %v43
  %v188 = vunpack.c.l.b16 %v44
  %v189 = vunpack.c.l.b16 %v45
  %v190 = vunpack.c.l.b16 %v46
  %v191 = vunpack.c.l.b16 %v47
  %v192 = vunpack.c.l.b16 %v48
  %v193 = vunpack.c.l.b16 %v49
  %v194 = vunpack.c.l.b16 %v50
  %v195 = vunpack.c.l.b16 %v51
  %v196 = vunpack.c.l.b16 %v52
  %v197 = vunpack.c.l.b16 %v53
  %v198 = vunpack.c.l.b16 %v54
  %v199 = vunpack.c.l.b16 %v55
  %v200 = vunpack.c.l.b16 %v56
  %v201 = vunpack.c.l.b16 %v57
  %v202 = vunpack.c.l.b16 %v58
  %v203 = vunpack.c.l.b16 %v59
  %v204 = vunpack.c.l.b16 %v60
  %v205 = vunpack.c.l.b16 %v61
  %v206 = vunpack.c.l.b16 %v62
  %v207 = vunpack.c.l.b16 %v63
  %v208 = vunpack.c.l.b16 %v64
  %v209 = vunpack.c.l.b16 %v65
  %v210 = vunpack.c.l.b16 %v66
  %v211 = vunpack.c.l.b16 %v67
  %v212 = vunpack.c.l.b16 %v68
  %v213 = vunpack.c.l.b16 %v69
  %v214 = vunpack.c.l.b16 %v70
  %v215 = vunpack.c.l.b16 %v71
  %v216 = vunpack.c.l.b16 %v72
  %v217 = vunpack.c.l.b16 %v73
  %v218 = vunpack.c.l.b16 %v74
  %v219 = vunpack.c.l.b16 %v75
  %v220 = vunpack.c.l.b16 %v76
  %v221 = vunpack.c.l.b16 %v77
  %v222 = vunpack.c.l.b16 %v78
  %v223 = vpack.c.b16 %v160, %v159
  %v224 = vpack.c.b16 %v162, %v161
  %v225 = vpack.c.b16 %v164, %v163
  %v226 = vpack.c.b16 %v166, %v165
  %v227 = vpack.c.b16 %v168, %v167
  %v228 = vpack.c.b16 %v170, %v169
  %v229 = vpack.c.b16 %v172, %v171
  %v230 = vpack.c.b16 %v174, %v173
  %v231 = vpack.c.b16 %v176, %v175
  %v232 = vpack.c.b16 %v178, %v177
  %v233 = vpack.c.b16 %v180, %v179
  %v234 = vpack.c.b16 %v182, %v181
  %v235 = vpack.c.b16 %v184, %v183
  %v236 = vpack.c.b16 %v186, %v185
  %v237 = vpack.c.b16 %v188, %v187
  %v238 = vpack.c.b16 %v190, %v189
  %v239 = vpack.c.b16 %v192, %v191
  %v240 = vpack.c.b16 %v194, %v193
  %v241 = vpack.c.b16 %v196, %v195
  %v242 = vpack.c.b16 %v198, %v197
  %v243 = vpack.c.b16 %v200, %v199
  %v244 = vpack.c.b16 %v202, %v201
  %v245 = vpack.c.b16 %v204, %v203
  %v246 = vpack.c.b16 %v206, %v205
  %v247 = vpack.c.b16 %v208, %v207
  %v248 = vpack.c.b16 %v210, %v209
  %v249 = vpack.c.b16 %v212, %v211
  %v250 = vpack.c.b16 %v214, %v213
  %v251 = vpack.c.b16 %v216, %v215
  %v252 = vpack.c.b16 %v218, %v217
  %v253 = vpack.c.b16 %v220, %v219
  %v254 = vpack.c.b16 %v222, %v221
  %v303 = vunpack.c.l.b16 %v79
  %v304 = vunpack.c.l.b16 %v80
  %v305 = vunpack.c.l.b16 %v81
  %v306 = vunpack.c.l.b16 %v82
  %v307 = vunpack.c.l.b16 %v83
  %v308 = vunpack.c.l.b16 %v84
  %v309 = vunpack.c.l.b16 %v85
  %v310 = vunpack.c.l.b16 %v86
  %v311 = vunpack.c.l.b16 %v87
  %v312 = vunpack.c.l.b16 %v88
  %v313 = vunpack.c.l.b16 %v89
  %v314 = vunpack.c.l.b16 %v90
  %v315 = vunpack.c.l.b16 %v91
  %v316 = vunpack.c.l.b16 %v92
  %v317 = vunpack.c.l.b16 %v93
  %v318 = vunpack.c.l.b16 %v94
  %v319 = vpack.c.b16 %v304, %v303
  %v320 = vpack.c.b16 %v306, %v305
  %v321 = vpack.c.b16 %v308, %v307
  %v322 = vpack.c.b16 %v310, %v309
  %v323 = vpack.c.b16 %v312, %v311
  %v324 = vpack.c.b16 %v314, %v313
  %v325 = vpack.c.b16 %v316, %v315
  %v326 = vpack.c.b16 %v318, %v317
  %335 = vmatprep.subr.bf16.mxu0 0
  %336 = vmatpush1.bf16.msra.mxu0 %v326
  %337 = vmatprep.subr.bf16.mxu0 0
  %338 = vmatpush1.bf16.msra.mxu0 %v325
  %339 = vmatprep.subr.bf16.mxu0 0
  %340 = vmatpush1.bf16.msra.mxu0 %v324
  %341 = vmatprep.subr.bf16.mxu0 0
  %342 = vmatpush1.bf16.msra.mxu0 %v323
  %343 = vmatprep.subr.bf16.mxu0 0
  %344 = vmatpush1.bf16.msra.mxu0 %v322
  %345 = vmatprep.subr.bf16.mxu0 0
  %346 = vmatpush1.bf16.msra.mxu0 %v321
  %347 = vmatprep.subr.bf16.mxu0 0
  %348 = vmatpush1.bf16.msra.mxu0 %v320
  %349 = vmatprep.subr.bf16.mxu0 0
  %350 = vmatpush1.bf16.msra.mxu0 %v319
  %351 = vmatprep.subr.bf16.mxu0 0
  %352 = vmatpush2.bf16.msra.mxu0 0
  %353 = vmatprep.subr.bf16.mxu0 0
  %354 = vmatpush2.bf16.msra.mxu0 0
  %355 = vmatprep.subr.bf16.mxu0 0
  %356 = vmatpush2.bf16.msra.mxu0 0
  %357 = vmatprep.subr.bf16.mxu0 0
  %358 = vmatpush2.bf16.msra.mxu0 0
  %359 = vmatprep.subr.bf16.mxu0 0
  %360 = vmatpush2.bf16.msra.mxu0 0
  %361 = vmatprep.subr.bf16.mxu0 0
  %362 = vmatpush2.bf16.msra.mxu0 0
  %363 = vmatprep.subr.bf16.mxu0 0
  %364 = vmatpush2.bf16.msra.mxu0 0
  %365 = vmatprep.subr.bf16.mxu0 0
  %366 = vmatpush2.bf16.msra.mxu0 0
  %367 = vmatprep.mubr.bf16.mxu0 0
  %368 = vmatmul.mubr.bf16.gmra.mxu0 %v223
  %v369 = vpop.f32.mrf.mxu0
  %v370 = vadd.f32 0.0, %v369
  %v371 = vpop.f32.mrf.mxu0
  %v372 = vpop.f32.mrf.mxu0
  %v373 = vadd.f32 0.0, %v372
  %v374 = vpop.f32.mrf.mxu0
  %375 = vmatprep.mubr.bf16.mxu0 0
  %376 = vmatmul.mubr.bf16.gmra.mxu0 %v224
  %v377 = vpop.f32.mrf.mxu0
  %v378 = vadd.f32 0.0, %v377
  %v379 = vpop.f32.mrf.mxu0
  %v380 = vpop.f32.mrf.mxu0
  %v381 = vadd.f32 0.0, %v380
  %v382 = vpop.f32.mrf.mxu0
  %383 = vmatprep.mubr.bf16.mxu0 0
  %384 = vmatmul.mubr.bf16.gmra.mxu0 %v225
  %v385 = vpop.f32.mrf.mxu0
  %v386 = vadd.f32 0.0, %v385
  %v387 = vpop.f32.mrf.mxu0
  %v388 = vpop.f32.mrf.mxu0
  %v389 = vadd.f32 0.0, %v388
  %v390 = vpop.f32.mrf.mxu0
  %391 = vmatprep.mubr.bf16.mxu0 0
  %392 = vmatmul.mubr.bf16.gmra.mxu0 %v226
  %v393 = vpop.f32.mrf.mxu0
  %v394 = vadd.f32 0.0, %v393
  %v395 = vpop.f32.mrf.mxu0
  %v396 = vpop.f32.mrf.mxu0
  %v397 = vadd.f32 0.0, %v396
  %v398 = vpop.f32.mrf.mxu0
  %399 = vmatprep.mubr.bf16.mxu0 0
  %400 = vmatmul.mubr.bf16.gmra.mxu0 %v227
  %v401 = vpop.f32.mrf.mxu0
  %v402 = vadd.f32 0.0, %v401
  %v403 = vpop.f32.mrf.mxu0
  %v404 = vpop.f32.mrf.mxu0
  %v405 = vadd.f32 0.0, %v404
  %v406 = vpop.f32.mrf.mxu0
  %407 = vmatprep.mubr.bf16.mxu0 0
  %408 = vmatmul.mubr.bf16.gmra.mxu0 %v228
  %v409 = vpop.f32.mrf.mxu0
  %v410 = vadd.f32 0.0, %v409
  %v411 = vpop.f32.mrf.mxu0
  %v412 = vpop.f32.mrf.mxu0
  %v413 = vadd.f32 0.0, %v412
  %v414 = vpop.f32.mrf.mxu0
  %415 = vmatprep.mubr.bf16.mxu0 0
  %416 = vmatmul.mubr.bf16.gmra.mxu0 %v229
  %v417 = vpop.f32.mrf.mxu0
  %v418 = vadd.f32 0.0, %v417
  %v419 = vpop.f32.mrf.mxu0
  %v420 = vpop.f32.mrf.mxu0
  %v421 = vadd.f32 0.0, %v420
  %v422 = vpop.f32.mrf.mxu0
  %423 = vmatprep.mubr.bf16.mxu0 0
  %424 = vmatmul.mubr.bf16.gmra.mxu0 %v230
  %v425 = vpop.f32.mrf.mxu0
  %v426 = vadd.f32 0.0, %v425
  %v427 = vpop.f32.mrf.mxu0
  %v428 = vpop.f32.mrf.mxu0
  %v429 = vadd.f32 0.0, %v428
  %v430 = vpop.f32.mrf.mxu0
  %431 = vmatprep.mubr.bf16.mxu0 0
  %432 = vmatmul.mubr.bf16.gmra.mxu0 %v231
  %v433 = vpop.f32.mrf.mxu0
  %v434 = vadd.f32 0.0, %v433
  %v435 = vpop.f32.mrf.mxu0
  %v436 = vpop.f32.mrf.mxu0
  %v437 = vadd.f32 0.0, %v436
  %v438 = vpop.f32.mrf.mxu0
  %439 = vmatprep.mubr.bf16.mxu0 0
  %440 = vmatmul.mubr.bf16.gmra.mxu0 %v232
  %v441 = vpop.f32.mrf.mxu0
  %v442 = vadd.f32 0.0, %v441
  %v443 = vpop.f32.mrf.mxu0
  %v444 = vpop.f32.mrf.mxu0
  %v445 = vadd.f32 0.0, %v444
  %v446 = vpop.f32.mrf.mxu0
  %447 = vmatprep.mubr.bf16.mxu0 0
  %448 = vmatmul.mubr.bf16.gmra.mxu0 %v233
  %v449 = vpop.f32.mrf.mxu0
  %v450 = vadd.f32 0.0, %v449
  %v451 = vpop.f32.mrf.mxu0
  %v452 = vpop.f32.mrf.mxu0
  %v453 = vadd.f32 0.0, %v452
  %v454 = vpop.f32.mrf.mxu0
  %455 = vmatprep.mubr.bf16.mxu0 0
  %456 = vmatmul.mubr.bf16.gmra.mxu0 %v234
  %v457 = vpop.f32.mrf.mxu0
  %v458 = vadd.f32 0.0, %v457
  %v459 = vpop.f32.mrf.mxu0
  %v460 = vpop.f32.mrf.mxu0
  %v461 = vadd.f32 0.0, %v460
  %v462 = vpop.f32.mrf.mxu0
  %463 = vmatprep.mubr.bf16.mxu0 0
  %464 = vmatmul.mubr.bf16.gmra.mxu0 %v235
  %v465 = vpop.f32.mrf.mxu0
  %v466 = vadd.f32 0.0, %v465
  %v467 = vpop.f32.mrf.mxu0
  %v468 = vpop.f32.mrf.mxu0
  %v469 = vadd.f32 0.0, %v468
  %v470 = vpop.f32.mrf.mxu0
  %471 = vmatprep.mubr.bf16.mxu0 0
  %472 = vmatmul.mubr.bf16.gmra.mxu0 %v236
  %v473 = vpop.f32.mrf.mxu0
  %v474 = vadd.f32 0.0, %v473
  %v475 = vpop.f32.mrf.mxu0
  %v476 = vpop.f32.mrf.mxu0
  %v477 = vadd.f32 0.0, %v476
  %v478 = vpop.f32.mrf.mxu0
  %479 = vmatprep.mubr.bf16.mxu0 0
  %480 = vmatmul.mubr.bf16.gmra.mxu0 %v237
  %v481 = vpop.f32.mrf.mxu0
  %v482 = vadd.f32 0.0, %v481
  %v483 = vpop.f32.mrf.mxu0
  %v484 = vpop.f32.mrf.mxu0
  %v485 = vadd.f32 0.0, %v484
  %v486 = vpop.f32.mrf.mxu0
  %487 = vmatprep.mubr.bf16.mxu0 0
  %488 = vmatmul.mubr.bf16.gmra.mxu0 %v238
  %v489 = vpop.f32.mrf.mxu0
  %v490 = vadd.f32 0.0, %v489
  %v491 = vpop.f32.mrf.mxu0
  %v492 = vpop.f32.mrf.mxu0
  %v493 = vadd.f32 0.0, %v492
  %v494 = vpop.f32.mrf.mxu0
  %495 = vmatprep.mubr.bf16.mxu0 0
  %496 = vmatmul.mubr.bf16.gmra.mxu0 %v239
  %v497 = vpop.f32.mrf.mxu0
  %v498 = vadd.f32 0.0, %v497
  %v499 = vpop.f32.mrf.mxu0
  %v500 = vpop.f32.mrf.mxu0
  %v501 = vadd.f32 0.0, %v500
  %v502 = vpop.f32.mrf.mxu0
  %503 = vmatprep.mubr.bf16.mxu0 0
  %504 = vmatmul.mubr.bf16.gmra.mxu0 %v240
  %v505 = vpop.f32.mrf.mxu0
  %v506 = vadd.f32 0.0, %v505
  %v507 = vpop.f32.mrf.mxu0
  %v508 = vpop.f32.mrf.mxu0
  %v509 = vadd.f32 0.0, %v508
  %v510 = vpop.f32.mrf.mxu0
  %511 = vmatprep.mubr.bf16.mxu0 0
  %512 = vmatmul.mubr.bf16.gmra.mxu0 %v241
  %v513 = vpop.f32.mrf.mxu0
  %v514 = vadd.f32 0.0, %v513
  %v515 = vpop.f32.mrf.mxu0
  %v516 = vpop.f32.mrf.mxu0
  %v517 = vadd.f32 0.0, %v516
  %v518 = vpop.f32.mrf.mxu0
  %519 = vmatprep.mubr.bf16.mxu0 0
  %520 = vmatmul.mubr.bf16.gmra.mxu0 %v242
  %v521 = vpop.f32.mrf.mxu0
  %v522 = vadd.f32 0.0, %v521
  %v523 = vpop.f32.mrf.mxu0
  %v524 = vpop.f32.mrf.mxu0
  %v525 = vadd.f32 0.0, %v524
  %v526 = vpop.f32.mrf.mxu0
  %527 = vmatprep.mubr.bf16.mxu0 0
  %528 = vmatmul.mubr.bf16.gmra.mxu0 %v243
  %v529 = vpop.f32.mrf.mxu0
  %v530 = vadd.f32 0.0, %v529
  %v531 = vpop.f32.mrf.mxu0
  %v532 = vpop.f32.mrf.mxu0
  %v533 = vadd.f32 0.0, %v532
  %v534 = vpop.f32.mrf.mxu0
  %535 = vmatprep.mubr.bf16.mxu0 0
  %536 = vmatmul.mubr.bf16.gmra.mxu0 %v244
  %v537 = vpop.f32.mrf.mxu0
  %v538 = vadd.f32 0.0, %v537
  %v539 = vpop.f32.mrf.mxu0
  %v540 = vpop.f32.mrf.mxu0
  %v541 = vadd.f32 0.0, %v540
  %v542 = vpop.f32.mrf.mxu0
  %543 = vmatprep.mubr.bf16.mxu0 0
  %544 = vmatmul.mubr.bf16.gmra.mxu0 %v245
  %v545 = vpop.f32.mrf.mxu0
  %v546 = vadd.f32 0.0, %v545
  %v547 = vpop.f32.mrf.mxu0
  %v548 = vpop.f32.mrf.mxu0
  %v549 = vadd.f32 0.0, %v548
  %v550 = vpop.f32.mrf.mxu0
  %551 = vmatprep.mubr.bf16.mxu0 0
  %552 = vmatmul.mubr.bf16.gmra.mxu0 %v246
  %v553 = vpop.f32.mrf.mxu0
  %v554 = vadd.f32 0.0, %v553
  %v555 = vpop.f32.mrf.mxu0
  %v556 = vpop.f32.mrf.mxu0
  %v557 = vadd.f32 0.0, %v556
  %v558 = vpop.f32.mrf.mxu0
  %559 = vmatprep.mubr.bf16.mxu0 0
  %560 = vmatmul.mubr.bf16.gmra.mxu0 %v247
  %v561 = vpop.f32.mrf.mxu0
  %v562 = vadd.f32 0.0, %v561
  %v563 = vpop.f32.mrf.mxu0
  %v564 = vpop.f32.mrf.mxu0
  %v565 = vadd.f32 0.0, %v564
  %v566 = vpop.f32.mrf.mxu0
  %567 = vmatprep.mubr.bf16.mxu0 0
  %568 = vmatmul.mubr.bf16.gmra.mxu0 %v248
  %v569 = vpop.f32.mrf.mxu0
  %v570 = vadd.f32 0.0, %v569
  %v571 = vpop.f32.mrf.mxu0
  %v572 = vpop.f32.mrf.mxu0
  %v573 = vadd.f32 0.0, %v572
  %v574 = vpop.f32.mrf.mxu0
  %575 = vmatprep.mubr.bf16.mxu0 0
  %576 = vmatmul.mubr.bf16.gmra.mxu0 %v249
  %v577 = vpop.f32.mrf.mxu0
  %v578 = vadd.f32 0.0, %v577
  %v579 = vpop.f32.mrf.mxu0
  %v580 = vpop.f32.mrf.mxu0
  %v581 = vadd.f32 0.0, %v580
  %v582 = vpop.f32.mrf.mxu0
  %583 = vmatprep.mubr.bf16.mxu0 0
  %584 = vmatmul.mubr.bf16.gmra.mxu0 %v250
  %v585 = vpop.f32.mrf.mxu0
  %v586 = vadd.f32 0.0, %v585
  %v587 = vpop.f32.mrf.mxu0
  %v588 = vpop.f32.mrf.mxu0
  %v589 = vadd.f32 0.0, %v588
  %v590 = vpop.f32.mrf.mxu0
  %591 = vmatprep.mubr.bf16.mxu0 0
  %592 = vmatmul.mubr.bf16.gmra.mxu0 %v251
  %v593 = vpop.f32.mrf.mxu0
  %v594 = vadd.f32 0.0, %v593
  %v595 = vpop.f32.mrf.mxu0
  %v596 = vpop.f32.mrf.mxu0
  %v597 = vadd.f32 0.0, %v596
  %v598 = vpop.f32.mrf.mxu0
  %599 = vmatprep.mubr.bf16.mxu0 0
  %600 = vmatmul.mubr.bf16.gmra.mxu0 %v252
  %v601 = vpop.f32.mrf.mxu0
  %v602 = vadd.f32 0.0, %v601
  %v603 = vpop.f32.mrf.mxu0
  %v604 = vpop.f32.mrf.mxu0
  %v605 = vadd.f32 0.0, %v604
  %v606 = vpop.f32.mrf.mxu0
  %607 = vmatprep.mubr.bf16.mxu0 0
  %608 = vmatmul.mubr.bf16.gmra.mxu0 %v253
  %v609 = vpop.f32.mrf.mxu0
  %v610 = vadd.f32 0.0, %v609
  %v611 = vpop.f32.mrf.mxu0
  %v612 = vpop.f32.mrf.mxu0
  %v613 = vadd.f32 0.0, %v612
  %v614 = vpop.f32.mrf.mxu0
  %615 = vmatprep.mubr.bf16.mxu0 0
  %616 = vmatmul.mubr.bf16.gmra.mxu0 %v254
  %v617 = vpop.f32.mrf.mxu0
  %v618 = vadd.f32 0.0, %v617
  %v619 = vpop.f32.mrf.mxu0
  %v620 = vpop.f32.mrf.mxu0
  %v621 = vadd.f32 0.0, %v620
  %v622 = vpop.f32.mrf.mxu0
  %623 = vdwg.mxu0
  %v624 = vld [vmem:[%s2] sm:$0xff]
  %v625 = vld [vmem:[%s2 + $0x8] sm:$0xff]
  %v626 = vld [vmem:[%s2 + $0x10] sm:$0xff]
  %v627 = vld [vmem:[%s2 + $0x18] sm:$0xff]
  %v628 = vld [vmem:[%s2 + $0x20] sm:$0xff]
  %v629 = vld [vmem:[%s2 + $0x28] sm:$0xff]
  %v630 = vld [vmem:[%s2 + $0x30] sm:$0xff]
  %v631 = vld [vmem:[%s2 + $0x38] sm:$0xff]
  %v632 = vld [vmem:[%s2 + $0x40] sm:$0xff]
  %v633 = vld [vmem:[%s2 + $0x48] sm:$0xff]
  %v634 = vld [vmem:[%s2 + $0x50] sm:$0xff]
  %v635 = vld [vmem:[%s2 + $0x58] sm:$0xff]
  %v636 = vld [vmem:[%s2 + $0x60] sm:$0xff]
  %v637 = vld [vmem:[%s2 + $0x68] sm:$0xff]
  %v638 = vld [vmem:[%s2 + $0x70] sm:$0xff]
  %v639 = vld [vmem:[%s2 + $0x78] sm:$0xff]
  %v640 = vld [vmem:[%s2 + $0x80] sm:$0xff]
  %v641 = vld [vmem:[%s2 + $0x88] sm:$0xff]
  %v642 = vld [vmem:[%s2 + $0x90] sm:$0xff]
  %v643 = vld [vmem:[%s2 + $0x98] sm:$0xff]
  %v644 = vld [vmem:[%s2 + $0xa0] sm:$0xff]
  %v645 = vld [vmem:[%s2 + $0xa8] sm:$0xff]
  %v646 = vld [vmem:[%s2 + $0xb0] sm:$0xff]
  %v647 = vld [vmem:[%s2 + $0xb8] sm:$0xff]
  %v648 = vld [vmem:[%s2 + $0xc0] sm:$0xff]
  %v649 = vld [vmem:[%s2 + $0xc8] sm:$0xff]
  %v650 = vld [vmem:[%s2 + $0xd0] sm:$0xff]
  %v651 = vld [vmem:[%s2 + $0xd8] sm:$0xff]
  %v652 = vld [vmem:[%s2 + $0xe0] sm:$0xff]
  %v653 = vld [vmem:[%s2 + $0xe8] sm:$0xff]
  %v654 = vld [vmem:[%s2 + $0xf0] sm:$0xff]
  %v655 = vld [vmem:[%s2 + $0xf8] sm:$0xff]
  %v656 = vld [vmem:[%s2 + $0x100] sm:$0xff]
  %v657 = vld [vmem:[%s2 + $0x108] sm:$0xff]
  %v658 = vld [vmem:[%s2 + $0x110] sm:$0xff]
  %v659 = vld [vmem:[%s2 + $0x118] sm:$0xff]
  %v660 = vld [vmem:[%s2 + $0x120] sm:$0xff]
  %v661 = vld [vmem:[%s2 + $0x128] sm:$0xff]
  %v662 = vld [vmem:[%s2 + $0x130] sm:$0xff]
  %v663 = vld [vmem:[%s2 + $0x138] sm:$0xff]
  %v664 = vld [vmem:[%s2 + $0x140] sm:$0xff]
  %v665 = vld [vmem:[%s2 + $0x148] sm:$0xff]
  %v666 = vld [vmem:[%s2 + $0x150] sm:$0xff]
  %v667 = vld [vmem:[%s2 + $0x158] sm:$0xff]
  %v668 = vld [vmem:[%s2 + $0x160] sm:$0xff]
  %v669 = vld [vmem:[%s2 + $0x168] sm:$0xff]
  %v670 = vld [vmem:[%s2 + $0x170] sm:$0xff]
  %v671 = vld [vmem:[%s2 + $0x178] sm:$0xff]
  %v672 = vld [vmem:[%s2 + $0x180] sm:$0xff]
  %v673 = vld [vmem:[%s2 + $0x188] sm:$0xff]
  %v674 = vld [vmem:[%s2 + $0x190] sm:$0xff]
  %v675 = vld [vmem:[%s2 + $0x198] sm:$0xff]
  %v676 = vld [vmem:[%s2 + $0x1a0] sm:$0xff]
  %v677 = vld [vmem:[%s2 + $0x1a8] sm:$0xff]
  %v678 = vld [vmem:[%s2 + $0x1b0] sm:$0xff]
  %v679 = vld [vmem:[%s2 + $0x1b8] sm:$0xff]
  %v680 = vld [vmem:[%s2 + $0x1c0] sm:$0xff]
  %v681 = vld [vmem:[%s2 + $0x1c8] sm:$0xff]
  %v682 = vld [vmem:[%s2 + $0x1d0] sm:$0xff]
  %v683 = vld [vmem:[%s2 + $0x1d8] sm:$0xff]
  %v684 = vld [vmem:[%s2 + $0x1e0] sm:$0xff]
  %v685 = vld [vmem:[%s2 + $0x1e8] sm:$0xff]
  %v686 = vld [vmem:[%s2 + $0x1f0] sm:$0xff]
  %v687 = vld [vmem:[%s2 + $0x1f8] sm:$0xff]
  %689 = vset.pattern.permute.xlu0 0
  %690 = vperm.xlu0 %689, %v624
  %v691 = vpop.permute.xlu0 %690
  %694 = vset.pattern.permute.xlu0 0
  %695 = vperm.xlu0 %694, %v625
  %v696 = vpop.permute.xlu0 %695
  %699 = vset.pattern.permute.xlu0 0
  %700 = vperm.xlu0 %699, %v626
  %v701 = vpop.permute.xlu0 %700
  %704 = vset.pattern.permute.xlu0 0
  %705 = vperm.xlu0 %704, %v627
  %v706 = vpop.permute.xlu0 %705
  %709 = vset.pattern.permute.xlu0 0
  %710 = vperm.xlu0 %709, %v628
  %v711 = vpop.permute.xlu0 %710
  %714 = vset.pattern.permute.xlu0 0
  %715 = vperm.xlu0 %714, %v629
  %v716 = vpop.permute.xlu0 %715
  %719 = vset.pattern.permute.xlu0 0
  %720 = vperm.xlu0 %719, %v630
  %v721 = vpop.permute.xlu0 %720
  %724 = vset.pattern.permute.xlu0 0
  %725 = vperm.xlu0 %724, %v631
  %v726 = vpop.permute.xlu0 %725
  %729 = vset.pattern.permute.xlu0 0
  %730 = vperm.xlu0 %729, %v632
  %v731 = vpop.permute.xlu0 %730
  %734 = vset.pattern.permute.xlu0 0
  %735 = vperm.xlu0 %734, %v633
  %v736 = vpop.permute.xlu0 %735
  %739 = vset.pattern.permute.xlu0 0
  %740 = vperm.xlu0 %739, %v634
  %v741 = vpop.permute.xlu0 %740
  %744 = vset.pattern.permute.xlu0 0
  %745 = vperm.xlu0 %744, %v635
  %v746 = vpop.permute.xlu0 %745
  %749 = vset.pattern.permute.xlu0 0
  %750 = vperm.xlu0 %749, %v636
  %v751 = vpop.permute.xlu0 %750
  %754 = vset.pattern.permute.xlu0 0
  %755 = vperm.xlu0 %754, %v637
  %v756 = vpop.permute.xlu0 %755
  %759 = vset.pattern.permute.xlu0 0
  %760 = vperm.xlu0 %759, %v638
  %v761 = vpop.permute.xlu0 %760
  %764 = vset.pattern.permute.xlu0 0
  %765 = vperm.xlu0 %764, %v639
  %v766 = vpop.permute.xlu0 %765
  %769 = vset.pattern.permute.xlu0 0
  %770 = vperm.xlu0 %769, %v640
  %v771 = vpop.permute.xlu0 %770
  %774 = vset.pattern.permute.xlu0 0
  %775 = vperm.xlu0 %774, %v641
  %v776 = vpop.permute.xlu0 %775
  %779 = vset.pattern.permute.xlu0 0
  %780 = vperm.xlu0 %779, %v642
  %v781 = vpop.permute.xlu0 %780
  %784 = vset.pattern.permute.xlu0 0
  %785 = vperm.xlu0 %784, %v643
  %v786 = vpop.permute.xlu0 %785
  %789 = vset.pattern.permute.xlu0 0
  %790 = vperm.xlu0 %789, %v644
  %v791 = vpop.permute.xlu0 %790
  %794 = vset.pattern.permute.xlu0 0
  %795 = vperm.xlu0 %794, %v645
  %v796 = vpop.permute.xlu0 %795
  %799 = vset.pattern.permute.xlu0 0
  %800 = vperm.xlu0 %799, %v646
  %v801 = vpop.permute.xlu0 %800
  %804 = vset.pattern.permute.xlu0 0
  %805 = vperm.xlu0 %804, %v647
  %v806 = vpop.permute.xlu0 %805
  %809 = vset.pattern.permute.xlu0 0
  %810 = vperm.xlu0 %809, %v648
  %v811 = vpop.permute.xlu0 %810
  %814 = vset.pattern.permute.xlu0 0
  %815 = vperm.xlu0 %814, %v649
  %v816 = vpop.permute.xlu0 %815
  %819 = vset.pattern.permute.xlu0 0
  %820 = vperm.xlu0 %819, %v650
  %v821 = vpop.permute.xlu0 %820
  %824 = vset.pattern.permute.xlu0 0
  %825 = vperm.xlu0 %824, %v651
  %v826 = vpop.permute.xlu0 %825
  %829 = vset.pattern.permute.xlu0 0
  %830 = vperm.xlu0 %829, %v652
  %v831 = vpop.permute.xlu0 %830
  %834 = vset.pattern.permute.xlu0 0
  %835 = vperm.xlu0 %834, %v653
  %v836 = vpop.permute.xlu0 %835
  %839 = vset.pattern.permute.xlu0 0
  %840 = vperm.xlu0 %839, %v654
  %v841 = vpop.permute.xlu0 %840
  %844 = vset.pattern.permute.xlu0 0
  %845 = vperm.xlu0 %844, %v655
  %v846 = vpop.permute.xlu0 %845
  %849 = vset.pattern.permute.xlu0 0
  %850 = vperm.xlu0 %849, %v656
  %v851 = vpop.permute.xlu0 %850
  %854 = vset.pattern.permute.xlu0 0
  %855 = vperm.xlu0 %854, %v657
  %v856 = vpop.permute.xlu0 %855
  %859 = vset.pattern.permute.xlu0 0
  %860 = vperm.xlu0 %859, %v658
  %v861 = vpop.permute.xlu0 %860
  %864 = vset.pattern.permute.xlu0 0
  %865 = vperm.xlu0 %864, %v659
  %v866 = vpop.permute.xlu0 %865
  %869 = vset.pattern.permute.xlu0 0
  %870 = vperm.xlu0 %869, %v660
  %v871 = vpop.permute.xlu0 %870
  %874 = vset.pattern.permute.xlu0 0
  %875 = vperm.xlu0 %874, %v661
  %v876 = vpop.permute.xlu0 %875
  %879 = vset.pattern.permute.xlu0 0
  %880 = vperm.xlu0 %879, %v662
  %v881 = vpop.permute.xlu0 %880
  %884 = vset.pattern.permute.xlu0 0
  %885 = vperm.xlu0 %884, %v663
  %v886 = vpop.permute.xlu0 %885
  %889 = vset.pattern.permute.xlu0 0
  %890 = vperm.xlu0 %889, %v664
  %v891 = vpop.permute.xlu0 %890
  %894 = vset.pattern.permute.xlu0 0
  %895 = vperm.xlu0 %894, %v665
  %v896 = vpop.permute.xlu0 %895
  %899 = vset.pattern.permute.xlu0 0
  %900 = vperm.xlu0 %899, %v666
  %v901 = vpop.permute.xlu0 %900
  %904 = vset.pattern.permute.xlu0 0
  %905 = vperm.xlu0 %904, %v667
  %v906 = vpop.permute.xlu0 %905
  %909 = vset.pattern.permute.xlu0 0
  %910 = vperm.xlu0 %909, %v668
  %v911 = vpop.permute.xlu0 %910
  %914 = vset.pattern.permute.xlu0 0
  %915 = vperm.xlu0 %914, %v669
  %v916 = vpop.permute.xlu0 %915
  %919 = vset.pattern.permute.xlu0 0
  %920 = vperm.xlu0 %919, %v670
  %v921 = vpop.permute.xlu0 %920
  %924 = vset.pattern.permute.xlu0 0
  %925 = vperm.xlu0 %924, %v671
  %v926 = vpop.permute.xlu0 %925
  %929 = vset.pattern.permute.xlu0 0
  %930 = vperm.xlu0 %929, %v672
  %v931 = vpop.permute.xlu0 %930
  %934 = vset.pattern.permute.xlu0 0
  %935 = vperm.xlu0 %934, %v673
  %v936 = vpop.permute.xlu0 %935
  %939 = vset.pattern.permute.xlu0 0
  %940 = vperm.xlu0 %939, %v674
  %v941 = vpop.permute.xlu0 %940
  %944 = vset.pattern.permute.xlu0 0
  %945 = vperm.xlu0 %944, %v675
  %v946 = vpop.permute.xlu0 %945
  %949 = vset.pattern.permute.xlu0 0
  %950 = vperm.xlu0 %949, %v676
  %v951 = vpop.permute.xlu0 %950
  %954 = vset.pattern.permute.xlu0 0
  %955 = vperm.xlu0 %954, %v677
  %v956 = vpop.permute.xlu0 %955
  %959 = vset.pattern.permute.xlu0 0
  %960 = vperm.xlu0 %959, %v678
  %v961 = vpop.permute.xlu0 %960
  %964 = vset.pattern.permute.xlu0 0
  %965 = vperm.xlu0 %964, %v679
  %v966 = vpop.permute.xlu0 %965
  %969 = vset.pattern.permute.xlu0 0
  %970 = vperm.xlu0 %969, %v680
  %v971 = vpop.permute.xlu0 %970
  %974 = vset.pattern.permute.xlu0 0
  %975 = vperm.xlu0 %974, %v681
  %v976 = vpop.permute.xlu0 %975
  %979 = vset.pattern.permute.xlu0 0
  %980 = vperm.xlu0 %979, %v682
  %v981 = vpop.permute.xlu0 %980
  %984 = vset.pattern.permute.xlu0 0
  %985 = vperm.xlu0 %984, %v683
  %v986 = vpop.permute.xlu0 %985
  %989 = vset.pattern.permute.xlu0 0
  %990 = vperm.xlu0 %989, %v684
  %v991 = vpop.permute.xlu0 %990
  %994 = vset.pattern.permute.xlu0 0
  %995 = vperm.xlu0 %994, %v685
  %v996 = vpop.permute.xlu0 %995
  %999 = vset.pattern.permute.xlu0 0
  %1000 = vperm.xlu0 %999, %v686
  %v1001 = vpop.permute.xlu0 %1000
  %1004 = vset.pattern.permute.xlu0 0
  %1005 = vperm.xlu0 %1004, %v687
  %v1006 = vpop.permute.xlu0 %1005
  %v1008 = vmul.f32 %v691, %v370
  %v1009 = vmul.f32 %v696, %v373
  %v1010 = vmul.f32 %v701, %v378
  %v1011 = vmul.f32 %v706, %v381
  %v1012 = vmul.f32 %v711, %v386
  %v1013 = vmul.f32 %v716, %v389
  %v1014 = vmul.f32 %v721, %v394
  %v1015 = vmul.f32 %v726, %v397
  %v1016 = vmul.f32 %v731, %v402
  %v1017 = vmul.f32 %v736, %v405
  %v1018 = vmul.f32 %v741, %v410
  %v1019 = vmul.f32 %v746, %v413
  %v1020 = vmul.f32 %v751, %v418
  %v1021 = vmul.f32 %v756, %v421
  %v1022 = vmul.f32 %v761, %v426
  %v1023 = vmul.f32 %v766, %v429
  %v1024 = vmul.f32 %v771, %v434
  %v1025 = vmul.f32 %v776, %v437
  %v1026 = vmul.f32 %v781, %v442
  %v1027 = vmul.f32 %v786, %v445
  %v1028 = vmul.f32 %v791, %v450
  %v1029 = vmul.f32 %v796, %v453
  %v1030 = vmul.f32 %v801, %v458
  %v1031 = vmul.f32 %v806, %v461
  %v1032 = vmul.f32 %v811, %v466
  %v1033 = vmul.f32 %v816, %v469
  %v1034 = vmul.f32 %v821, %v474
  %v1035 = vmul.f32 %v826, %v477
  %v1036 = vmul.f32 %v831, %v482
  %v1037 = vmul.f32 %v836, %v485
  %v1038 = vmul.f32 %v841, %v490
  %v1039 = vmul.f32 %v846, %v493
  %v1040 = vmul.f32 %v851, %v498
  %v1041 = vmul.f32 %v856, %v501
  %v1042 = vmul.f32 %v861, %v506
  %v1043 = vmul.f32 %v866, %v509
  %v1044 = vmul.f32 %v871, %v514
  %v1045 = vmul.f32 %v876, %v517
  %v1046 = vmul.f32 %v881, %v522
  %v1047 = vmul.f32 %v886, %v525
  %v1048 = vmul.f32 %v891, %v530
  %v1049 = vmul.f32 %v896, %v533
  %v1050 = vmul.f32 %v901, %v538
  %v1051 = vmul.f32 %v906, %v541
  %v1052 = vmul.f32 %v911, %v546
  %v1053 = vmul.f32 %v916, %v549
  %v1054 = vmul.f32 %v921, %v554
  %v1055 = vmul.f32 %v926, %v557
  %v1056 = vmul.f32 %v931, %v562
  %v1057 = vmul.f32 %v936, %v565
  %v1058 = vmul.f32 %v941, %v570
  %v1059 = vmul.f32 %v946, %v573
  %v1060 = vmul.f32 %v951, %v578
  %v1061 = vmul.f32 %v956, %v581
  %v1062 = vmul.f32 %v961, %v586
  %v1063 = vmul.f32 %v966, %v589
  %v1064 = vmul.f32 %v971, %v594
  %v1065 = vmul.f32 %v976, %v597
  %v1066 = vmul.f32 %v981, %v602
  %v1067 = vmul.f32 %v986, %v605
  %v1068 = vmul.f32 %v991, %v610
  %v1069 = vmul.f32 %v996, %v613
  %v1070 = vmul.f32 %v1001, %v618
  %v1071 = vmul.f32 %v1006, %v621
  %v1072 = vpack.c.bf16 %v1009, %v1008
  %v1073 = vpack.c.bf16 %v1011, %v1010
  %v1074 = vpack.c.bf16 %v1013, %v1012
  %v1075 = vpack.c.bf16 %v1015, %v1014
  %v1076 = vpack.c.bf16 %v1017, %v1016
  %v1077 = vpack.c.bf16 %v1019, %v1018
  %v1078 = vpack.c.bf16 %v1021, %v1020
  %v1079 = vpack.c.bf16 %v1023, %v1022
  %v1080 = vpack.c.bf16 %v1025, %v1024
  %v1081 = vpack.c.bf16 %v1027, %v1026
  %v1082 = vpack.c.bf16 %v1029, %v1028
  %v1083 = vpack.c.bf16 %v1031, %v1030
  %v1084 = vpack.c.bf16 %v1033, %v1032
  %v1085 = vpack.c.bf16 %v1035, %v1034
  %v1086 = vpack.c.bf16 %v1037, %v1036
  %v1087 = vpack.c.bf16 %v1039, %v1038
  %v1088 = vpack.c.bf16 %v1041, %v1040
  %v1089 = vpack.c.bf16 %v1043, %v1042
  %v1090 = vpack.c.bf16 %v1045, %v1044
  %v1091 = vpack.c.bf16 %v1047, %v1046
  %v1092 = vpack.c.bf16 %v1049, %v1048
  %v1093 = vpack.c.bf16 %v1051, %v1050
  %v1094 = vpack.c.bf16 %v1053, %v1052
  %v1095 = vpack.c.bf16 %v1055, %v1054
  %v1096 = vpack.c.bf16 %v1057, %v1056
  %v1097 = vpack.c.bf16 %v1059, %v1058
  %v1098 = vpack.c.bf16 %v1061, %v1060
  %v1099 = vpack.c.bf16 %v1063, %v1062
  %v1100 = vpack.c.bf16 %v1065, %v1064
  %v1101 = vpack.c.bf16 %v1067, %v1066
  %v1102 = vpack.c.bf16 %v1069, %v1068
  %v1103 = vpack.c.bf16 %v1071, %v1070
  %v1136 = vunpack.c.l.b16 %v1072
  %v1137 = vunpack.c.h.b16 %v1072
  %v1138 = vunpack.c.l.b16 %v1073
  %v1139 = vunpack.c.h.b16 %v1073
  %v1140 = vunpack.c.l.b16 %v1074
  %v1141 = vunpack.c.h.b16 %v1074
  %v1142 = vunpack.c.l.b16 %v1075
  %v1143 = vunpack.c.h.b16 %v1075
  %v1144 = vunpack.c.l.b16 %v1076
  %v1145 = vunpack.c.h.b16 %v1076
  %v1146 = vunpack.c.l.b16 %v1077
  %v1147 = vunpack.c.h.b16 %v1077
  %v1148 = vunpack.c.l.b16 %v1078
  %v1149 = vunpack.c.h.b16 %v1078
  %v1150 = vunpack.c.l.b16 %v1079
  %v1151 = vunpack.c.h.b16 %v1079
  %v1152 = vunpack.c.l.b16 %v1080
  %v1153 = vunpack.c.h.b16 %v1080
  %v1154 = vunpack.c.l.b16 %v1081
  %v1155 = vunpack.c.h.b16 %v1081
  %v1156 = vunpack.c.l.b16 %v1082
  %v1157 = vunpack.c.h.b16 %v1082
  %v1158 = vunpack.c.l.b16 %v1083
  %v1159 = vunpack.c.h.b16 %v1083
  %v1160 = vunpack.c.l.b16 %v1084
  %v1161 = vunpack.c.h.b16 %v1084
  %v1162 = vunpack.c.l.b16 %v1085
  %v1163 = vunpack.c.h.b16 %v1085
  %v1164 = vunpack.c.l.b16 %v1086
  %v1165 = vunpack.c.h.b16 %v1086
  %v1166 = vunpack.c.l.b16 %v1087
  %v1167 = vunpack.c.h.b16 %v1087
  %v1168 = vunpack.c.l.b16 %v1088
  %v1169 = vunpack.c.h.b16 %v1088
  %v1170 = vunpack.c.l.b16 %v1089
  %v1171 = vunpack.c.h.b16 %v1089
  %v1172 = vunpack.c.l.b16 %v1090
  %v1173 = vunpack.c.h.b16 %v1090
  %v1174 = vunpack.c.l.b16 %v1091
  %v1175 = vunpack.c.h.b16 %v1091
  %v1176 = vunpack.c.l.b16 %v1092
  %v1177 = vunpack.c.h.b16 %v1092
  %v1178 = vunpack.c.l.b16 %v1093
  %v1179 = vunpack.c.h.b16 %v1093
  %v1180 = vunpack.c.l.b16 %v1094
  %v1181 = vunpack.c.h.b16 %v1094
  %v1182 = vunpack.c.l.b16 %v1095
  %v1183 = vunpack.c.h.b16 %v1095
  %v1184 = vunpack.c.l.b16 %v1096
  %v1185 = vunpack.c.h.b16 %v1096
  %v1186 = vunpack.c.l.b16 %v1097
  %v1187 = vunpack.c.h.b16 %v1097
  %v1188 = vunpack.c.l.b16 %v1098
  %v1189 = vunpack.c.h.b16 %v1098
  %v1190 = vunpack.c.l.b16 %v1099
  %v1191 = vunpack.c.h.b16 %v1099
  %v1192 = vunpack.c.l.b16 %v1100
  %v1193 = vunpack.c.h.b16 %v1100
  %v1194 = vunpack.c.l.b16 %v1101
  %v1195 = vunpack.c.h.b16 %v1101
  %v1196 = vunpack.c.l.b16 %v1102
  %v1197 = vunpack.c.h.b16 %v1102
  %v1198 = vunpack.c.l.b16 %v1103
  %v1199 = vunpack.c.h.b16 %v1103
  %v1200 = vpack.c.b16 %v1136, %v1136
  %v1201 = vpack.c.b16 %v1137, %v1137
  %v1202 = vpack.c.b16 %v1138, %v1138
  %v1203 = vpack.c.b16 %v1139, %v1139
  %v1204 = vpack.c.b16 %v1140, %v1140
  %v1205 = vpack.c.b16 %v1141, %v1141
  %v1206 = vpack.c.b16 %v1142, %v1142
  %v1207 = vpack.c.b16 %v1143, %v1143
  %v1208 = vpack.c.b16 %v1144, %v1144
  %v1209 = vpack.c.b16 %v1145, %v1145
  %v1210 = vpack.c.b16 %v1146, %v1146
  %v1211 = vpack.c.b16 %v1147, %v1147
  %v1212 = vpack.c.b16 %v1148, %v1148
  %v1213 = vpack.c.b16 %v1149, %v1149
  %v1214 = vpack.c.b16 %v1150, %v1150
  %v1215 = vpack.c.b16 %v1151, %v1151
  %v1216 = vpack.c.b16 %v1152, %v1152
  %v1217 = vpack.c.b16 %v1153, %v1153
  %v1218 = vpack.c.b16 %v1154, %v1154
  %v1219 = vpack.c.b16 %v1155, %v1155
  %v1220 = vpack.c.b16 %v1156, %v1156
  %v1221 = vpack.c.b16 %v1157, %v1157
  %v1222 = vpack.c.b16 %v1158, %v1158
  %v1223 = vpack.c.b16 %v1159, %v1159
  %v1224 = vpack.c.b16 %v1160, %v1160
  %v1225 = vpack.c.b16 %v1161, %v1161
  %v1226 = vpack.c.b16 %v1162, %v1162
  %v1227 = vpack.c.b16 %v1163, %v1163
  %v1228 = vpack.c.b16 %v1164, %v1164
  %v1229 = vpack.c.b16 %v1165, %v1165
  %v1230 = vpack.c.b16 %v1166, %v1166
  %v1231 = vpack.c.b16 %v1167, %v1167
  %v1232 = vpack.c.b16 %v1168, %v1168
  %v1233 = vpack.c.b16 %v1169, %v1169
  %v1234 = vpack.c.b16 %v1170, %v1170
  %v1235 = vpack.c.b16 %v1171, %v1171
  %v1236 = vpack.c.b16 %v1172, %v1172
  %v1237 = vpack.c.b16 %v1173, %v1173
  %v1238 = vpack.c.b16 %v1174, %v1174
  %v1239 = vpack.c.b16 %v1175, %v1175
  %v1240 = vpack.c.b16 %v1176, %v1176
  %v1241 = vpack.c.b16 %v1177, %v1177
  %v1242 = vpack.c.b16 %v1178, %v1178
  %v1243 = vpack.c.b16 %v1179, %v1179
  %v1244 = vpack.c.b16 %v1180, %v1180
  %v1245 = vpack.c.b16 %v1181, %v1181
  %v1246 = vpack.c.b16 %v1182, %v1182
  %v1247 = vpack.c.b16 %v1183, %v1183
  %v1248 = vpack.c.b16 %v1184, %v1184
  %v1249 = vpack.c.b16 %v1185, %v1185
  %v1250 = vpack.c.b16 %v1186, %v1186
  %v1251 = vpack.c.b16 %v1187, %v1187
  %v1252 = vpack.c.b16 %v1188, %v1188
  %v1253 = vpack.c.b16 %v1189, %v1189
  %v1254 = vpack.c.b16 %v1190, %v1190
  %v1255 = vpack.c.b16 %v1191, %v1191
  %v1256 = vpack.c.b16 %v1192, %v1192
  %v1257 = vpack.c.b16 %v1193, %v1193
  %v1258 = vpack.c.b16 %v1194, %v1194
  %v1259 = vpack.c.b16 %v1195, %v1195
  %v1260 = vpack.c.b16 %v1196, %v1196
  %v1261 = vpack.c.b16 %v1197, %v1197
  %v1262 = vpack.c.b16 %v1198, %v1198
  %v1263 = vpack.c.b16 %v1199, %v1199
  %1328 = vst [vmem:[%s3] sm:$0xf] %v1200
  %1329 = vst [vmem:[%s3 + $0x4] sm:$0xf] %v1201
  %1330 = vst [vmem:[%s3 + $0x8] sm:$0xf] %v1202
  %1331 = vst [vmem:[%s3 + $0xc] sm:$0xf] %v1203
  %1332 = vst [vmem:[%s3 + $0x10] sm:$0xf] %v1204
  %1333 = vst [vmem:[%s3 + $0x14] sm:$0xf] %v1205
  %1334 = vst [vmem:[%s3 + $0x18] sm:$0xf] %v1206
  %1335 = vst [vmem:[%s3 + $0x1c] sm:$0xf] %v1207
  %1336 = vst [vmem:[%s3 + $0x20] sm:$0xf] %v1208
  %1337 = vst [vmem:[%s3 + $0x24] sm:$0xf] %v1209
  %1338 = vst [vmem:[%s3 + $0x28] sm:$0xf] %v1210
  %1339 = vst [vmem:[%s3 + $0x2c] sm:$0xf] %v1211
  %1340 = vst [vmem:[%s3 + $0x30] sm:$0xf] %v1212
  %1341 = vst [vmem:[%s3 + $0x34] sm:$0xf] %v1213
  %1342 = vst [vmem:[%s3 + $0x38] sm:$0xf] %v1214
  %1343 = vst [vmem:[%s3 + $0x3c] sm:$0xf] %v1215
  %1344 = vst [vmem:[%s3 + $0x40] sm:$0xf] %v1216
  %1345 = vst [vmem:[%s3 + $0x44] sm:$0xf] %v1217
  %1346 = vst [vmem:[%s3 + $0x48] sm:$0xf] %v1218
  %1347 = vst [vmem:[%s3 + $0x4c] sm:$0xf] %v1219
  %1348 = vst [vmem:[%s3 + $0x50] sm:$0xf] %v1220
  %1349 = vst [vmem:[%s3 + $0x54] sm:$0xf] %v1221
  %1350 = vst [vmem:[%s3 + $0x58] sm:$0xf] %v1222
  %1351 = vst [vmem:[%s3 + $0x5c] sm:$0xf] %v1223
  %1352 = vst [vmem:[%s3 + $0x60] sm:$0xf] %v1224
  %1353 = vst [vmem:[%s3 + $0x64] sm:$0xf] %v1225
  %1354 = vst [vmem:[%s3 + $0x68] sm:$0xf] %v1226
  %1355 = vst [vmem:[%s3 + $0x6c] sm:$0xf] %v1227
  %1356 = vst [vmem:[%s3 + $0x70] sm:$0xf] %v1228
  %1357 = vst [vmem:[%s3 + $0x74] sm:$0xf] %v1229
  %1358 = vst [vmem:[%s3 + $0x78] sm:$0xf] %v1230
  %1359 = vst [vmem:[%s3 + $0x7c] sm:$0xf] %v1231
  %1360 = vst [vmem:[%s3 + $0x80] sm:$0xf] %v1232
  %1361 = vst [vmem:[%s3 + $0x84] sm:$0xf] %v1233
  %1362 = vst [vmem:[%s3 + $0x88] sm:$0xf] %v1234
  %1363 = vst [vmem:[%s3 + $0x8c] sm:$0xf] %v1235
  %1364 = vst [vmem:[%s3 + $0x90] sm:$0xf] %v1236
  %1365 = vst [vmem:[%s3 + $0x94] sm:$0xf] %v1237
  %1366 = vst [vmem:[%s3 + $0x98] sm:$0xf] %v1238
  %1367 = vst [vmem:[%s3 + $0x9c] sm:$0xf] %v1239
  %1368 = vst [vmem:[%s3 + $0xa0] sm:$0xf] %v1240
  %1369 = vst [vmem:[%s3 + $0xa4] sm:$0xf] %v1241
  %1370 = vst [vmem:[%s3 + $0xa8] sm:$0xf] %v1242
  %1371 = vst [vmem:[%s3 + $0xac] sm:$0xf] %v1243
  %1372 = vst [vmem:[%s3 + $0xb0] sm:$0xf] %v1244
  %1373 = vst [vmem:[%s3 + $0xb4] sm:$0xf] %v1245
  %1374 = vst [vmem:[%s3 + $0xb8] sm:$0xf] %v1246
  %1375 = vst [vmem:[%s3 + $0xbc] sm:$0xf] %v1247
  %1376 = vst [vmem:[%s3 + $0xc0] sm:$0xf] %v1248
  %1377 = vst [vmem:[%s3 + $0xc4] sm:$0xf] %v1249
  %1378 = vst [vmem:[%s3 + $0xc8] sm:$0xf] %v1250
  %1379 = vst [vmem:[%s3 + $0xcc] sm:$0xf] %v1251
  %1380 = vst [vmem:[%s3 + $0xd0] sm:$0xf] %v1252
  %1381 = vst [vmem:[%s3 + $0xd4] sm:$0xf] %v1253
  %1382 = vst [vmem:[%s3 + $0xd8] sm:$0xf] %v1254
  %1383 = vst [vmem:[%s3 + $0xdc] sm:$0xf] %v1255
  %1384 = vst [vmem:[%s3 + $0xe0] sm:$0xf] %v1256
  %1385 = vst [vmem:[%s3 + $0xe4] sm:$0xf] %v1257
  %1386 = vst [vmem:[%s3 + $0xe8] sm:$0xf] %v1258
  %1387 = vst [vmem:[%s3 + $0xec] sm:$0xf] %v1259
  %1388 = vst [vmem:[%s3 + $0xf0] sm:$0xf] %v1260
  %1389 = vst [vmem:[%s3 + $0xf4] sm:$0xf] %v1261
  %1390 = vst [vmem:[%s3 + $0xf8] sm:$0xf] %v1262
  %1391 = vst [vmem:[%s3 + $0xfc] sm:$0xf] %v1263
  // Predicated region
  $region14: #{gnn_encode.2} parent=0 // pred_check
    _
  $region15: #{gnn_encode.2} parent=0 // pred_check_branch
    %1393 = sbr.rel (0) target = $region17
  $region16: #{gnn_encode.2} parent=0 // pred_region
    _
  $region17: #{gnn_encode.2} parent=0 // pred_fallthru
    _
  // Predicated region
  $region18: #{gnn_encode.2} parent=0 // pred_check
    _
  $region19: #{gnn_encode.2} parent=0 // pred_check_branch
    %1395 = sbr.rel (0) target = $region21
  $region20: #{gnn_encode.2} parent=0 // pred_region
    _
  $region21: #{gnn_encode.2} parent=0 // pred_fallthru
    _

// kernel: gnn_encode.3
$region0: #{gnn_encode.3}
  #allocation0 [shape = 'u32[]', space=smem, size = 0x4, offset = 0x4, fixed_abs, tag = 'smem constant byte address 0x4 - core index']
  #allocation1 [shape = 'u32[144,128]{1,0:T(1,128)}', space=vmem, size = 0x12000, scoped, tag = 'internal scratch']
  %s0 = inlined_call_operand.vmem [shape: bf16[512,512], index: 0, kind: input, shape index: {}]
  %s1 = inlined_call_operand.vmem [shape: bf16[512,128], index: 1, kind: input, shape index: {}]
  %s2 = inlined_call_operand.vmem [shape: f32[512,1], index: 2, kind: input, shape index: {}]
  %s3 = inlined_call_operand.vmem [shape: f32[1,128], index: 3, kind: input, shape index: {}]
  %s4 = inlined_call_operand.vmem [shape: f32[512,128], index: 4, kind: output, shape index: {0}]
  %s5 = inlined_call_operand.vmem [shape: f32[2,1,128], index: 5, kind: output, shape index: {1}]
  %6 = xla_tuple %s4, %s5
  %s7 = sld [smem:[#allocation0]]
  $region57: #{gnn_encode.3} parent=0
    _
  %s9 = ssub.s32 1, %s7
  %s10 = scalar_select 0, %s9, %s7
  loop: start=0, step=1, limit=4
  $region2: #{gnn_encode.3} parent=0 // loop_pre_header
    _
  $region3: #{gnn_encode.3} parent=0 // loop_header
    %s12 = sphi 0, %s16
    %p13 = scmp.ge.s32.totalorder %s12, 4
    %s22 = sphi 0, %s24
    %s25 = sphi 0, %s22
    %s26 = sphi 0, %s25
    %s42 = sphi 0, %s26
    %s46 = sphi 0, %s46
    %s48 = sphi 0, %s46
    %s49 = sphi 0, %s48
    %s63 = sphi 0, %s49
    %s69 = sphi 0, %s71
    %s72 = sphi 0, %s69
    %s73 = sphi 0, %s72
    %s89 = sphi 0, %s73
    %s93 = sphi 0, %s93
    %s95 = sphi 0, %s93
    %s96 = sphi 0, %s95
    %s110 = sphi 0, %s96
    %s116 = sphi 0, %s118
    %s119 = sphi 0, %s116
    %s120 = sphi 0, %s119
    %s136 = sphi 0, %s120
    %s142 = sphi 0, %s144
    %s145 = sphi 0, %s142
    %s146 = sphi 0, %s145
    %s162 = sphi 0, %s146
  $region4: #{gnn_encode.3} parent=0 // loop_header_branch
    %15 = sbr.rel (%p13) target = $region8
  $region5: #{gnn_encode.3} parent=0 // loop_body
    %s17 = ssub.s32 %s12, 1
    %s18 = ssub.s32 %s12, 2
    %s19 = sadd.s32 %s12, 1
    %s20 = ssub.s32 %s12, %s19
    %p21 = scmp.eq.s32.totalorder %s20, 0
    %s23 = sadd.s32 %s22, 1
    %s24 = scalar_select %p21, %s22, %s23
    %p27 = pneg %p21
    %p28 = scmp.eq.s32.totalorder %s12, 1
    %p29 = por %p27, %p28
    %p30 = scmp.ne.s32.totalorder %s22, %s25
    %p31 = scmp.eq.s32.totalorder %s12, 0
    %p32 = por %p30, %p31
    %p33 = scmp.ne.s32.totalorder %s22, %s25
    %p34 = scmp.eq.s32.totalorder %s17, 1
    %p35 = por %p33, %p34
    %p36 = scmp.ne.s32.totalorder %s25, %s26
    %p37 = scmp.eq.s32.totalorder %s17, 0
    %p38 = por %p36, %p37
    %p39 = scmp.ne.s32.totalorder %s25, %s26
    %p40 = scmp.eq.s32.totalorder %s18, 1
    %p41 = por %p39, %p40
    %p43 = scmp.ne.s32.totalorder %s26, %s42
    %p44 = scmp.eq.s32.totalorder %s18, 0
    %p45 = por %p43, %p44
    %s47 = sadd.s32 %s46, 1
    %p50 = scmp.eq.s32.totalorder %s12, 1
    %p51 = scmp.ne.s32.totalorder %s46, %s48
    %p52 = scmp.eq.s32.totalorder %s12, 0
    %p53 = por %p51, %p52
    %p54 = scmp.ne.s32.totalorder %s46, %s48
    %p55 = scmp.eq.s32.totalorder %s17, 1
    %p56 = por %p54, %p55
    %p57 = scmp.ne.s32.totalorder %s48, %s49
    %p58 = scmp.eq.s32.totalorder %s17, 0
    %p59 = por %p57, %p58
    %p60 = scmp.ne.s32.totalorder %s48, %s49
    %p61 = scmp.eq.s32.totalorder %s18, 1
    %p62 = por %p60, %p61
    %p64 = scmp.ne.s32.totalorder %s49, %s63
    %p65 = scmp.eq.s32.totalorder %s18, 0
    %p66 = por %p64, %p65
    %s67 = ssub.s32 %s12, %s19
    %p68 = scmp.eq.s32.totalorder %s67, 0
    %s70 = sadd.s32 %s69, 1
    %s71 = scalar_select %p68, %s69, %s70
    %p74 = pneg %p68
    %p75 = scmp.eq.s32.totalorder %s12, 1
    %p76 = por %p74, %p75
    %p77 = scmp.ne.s32.totalorder %s69, %s72
    %p78 = scmp.eq.s32.totalorder %s12, 0
    %p79 = por %p77, %p78
    %p80 = scmp.ne.s32.totalorder %s69, %s72
    %p81 = scmp.eq.s32.totalorder %s17, 1
    %p82 = por %p80, %p81
    %p83 = scmp.ne.s32.totalorder %s72, %s73
    %p84 = scmp.eq.s32.totalorder %s17, 0
    %p85 = por %p83, %p84
    %p86 = scmp.ne.s32.totalorder %s72, %s73
    %p87 = scmp.eq.s32.totalorder %s18, 1
    %p88 = por %p86, %p87
    %p90 = scmp.ne.s32.totalorder %s73, %s89
    %p91 = scmp.eq.s32.totalorder %s18, 0
    %p92 = por %p90, %p91
    %s94 = sadd.s32 %s93, 1
    %p97 = scmp.eq.s32.totalorder %s12, 1
    %p98 = scmp.ne.s32.totalorder %s93, %s95
    %p99 = scmp.eq.s32.totalorder %s12, 0
    %p100 = por %p98, %p99
    %p101 = scmp.ne.s32.totalorder %s93, %s95
    %p102 = scmp.eq.s32.totalorder %s17, 1
    %p103 = por %p101, %p102
    %p104 = scmp.ne.s32.totalorder %s95, %s96
    %p105 = scmp.eq.s32.totalorder %s17, 0
    %p106 = por %p104, %p105
    %p107 = scmp.ne.s32.totalorder %s95, %s96
    %p108 = scmp.eq.s32.totalorder %s18, 1
    %p109 = por %p107, %p108
    %p111 = scmp.ne.s32.totalorder %s96, %s110
    %p112 = scmp.eq.s32.totalorder %s18, 0
    %p113 = por %p111, %p112
    %s114 = ssub.s32 %s12, %s19
    %p115 = scmp.eq.s32.totalorder %s114, 0
    %s117 = sadd.s32 %s116, 1
    %s118 = scalar_select %p115, %s116, %s117
    %p121 = pneg %p115
    %p122 = scmp.eq.s32.totalorder %s12, 1
    %p123 = por %p121, %p122
    %p124 = scmp.ne.s32.totalorder %s116, %s119
    %p125 = scmp.eq.s32.totalorder %s12, 0
    %p126 = por %p124, %p125
    %p127 = scmp.ne.s32.totalorder %s116, %s119
    %p128 = scmp.eq.s32.totalorder %s17, 1
    %p129 = por %p127, %p128
    %p130 = scmp.ne.s32.totalorder %s119, %s120
    %p131 = scmp.eq.s32.totalorder %s17, 0
    %p132 = por %p130, %p131
    %p133 = scmp.ne.s32.totalorder %s119, %s120
    %p134 = scmp.eq.s32.totalorder %s18, 1
    %p135 = por %p133, %p134
    %p137 = scmp.ne.s32.totalorder %s120, %s136
    %p138 = scmp.eq.s32.totalorder %s18, 0
    %p139 = por %p137, %p138
    %s140 = ssub.s32 %s12, %s19
    %p141 = scmp.eq.s32.totalorder %s140, 0
    %s143 = sadd.s32 %s142, 1
    %s144 = scalar_select %p141, %s142, %s143
    %p147 = pneg %p141
    %p148 = scmp.eq.s32.totalorder %s12, 1
    %p149 = por %p147, %p148
    %p150 = scmp.ne.s32.totalorder %s142, %s145
    %p151 = scmp.eq.s32.totalorder %s12, 0
    %p152 = por %p150, %p151
    %p153 = scmp.ne.s32.totalorder %s142, %s145
    %p154 = scmp.eq.s32.totalorder %s17, 1
    %p155 = por %p153, %p154
    %p156 = scmp.ne.s32.totalorder %s145, %s146
    %p157 = scmp.eq.s32.totalorder %s17, 0
    %p158 = por %p156, %p157
    %p159 = scmp.ne.s32.totalorder %s145, %s146
    %p160 = scmp.eq.s32.totalorder %s18, 1
    %p161 = por %p159, %p160
    %p163 = scmp.ne.s32.totalorder %s146, %s162
    %p164 = scmp.eq.s32.totalorder %s18, 0
    %p165 = por %p163, %p164
    %p166 = scmp.le.s32.totalorder 1, %s12
    %p167 = scmp.lt.s32.totalorder %s12, 3
    %p168 = pnand %p166, %p167
    %p169 = pneg %p168
    // Predicated region
    $region9: #{gnn_encode.3} parent=5 // pred_check
      _
    $region10: #{gnn_encode.3} parent=5 // pred_check_branch
      %171 = sbr.rel (%p168) target = $region12
    $region11: #{gnn_encode.3} parent=5 // pred_region
      %s172 = ssub.s32 %s12, 1
      // Predicated region
      $region13: #{gnn_encode.3} parent=11 // pred_check
        %p173 = pneg %p59
      $region14: #{gnn_encode.3} parent=11 // pred_check_branch
        %175 = sbr.rel (%p173) target = $region16
      $region15: #{gnn_encode.3} parent=11 // pred_region
        _
      $region16: #{gnn_encode.3} parent=11 // pred_fallthru
        _
      // Predicated region
      $region17: #{gnn_encode.3} parent=11 // pred_check
        %p176 = pneg %p106
      $region18: #{gnn_encode.3} parent=11 // pred_check_branch
        %178 = sbr.rel (%p176) target = $region20
      $region19: #{gnn_encode.3} parent=11 // pred_region
        _
      $region20: #{gnn_encode.3} parent=11 // pred_fallthru
        _
    $region12: #{gnn_encode.3} parent=5 // pred_fallthru
      _
    %p179 = scmp.lt.s32.totalorder %s12, 2
    // Predicated region
    $region21: #{gnn_encode.3} parent=5 // pred_check
      %p180 = pneg %p179
    $region22: #{gnn_encode.3} parent=5 // pred_check_branch
      %182 = sbr.rel (%p180) target = $region24
    $region23: #{gnn_encode.3} parent=5 // pred_region
      // Predicated region
      $region25: #{gnn_encode.3} parent=23 // pred_check
        %p183 = pneg %p32
      $region26: #{gnn_encode.3} parent=23 // pred_check_branch
        %185 = sbr.rel (%p183) target = $region28
      $region27: #{gnn_encode.3} parent=23 // pred_region
        %s186 = smul.u32 32, %s12
        %p187 = scmp.lt.s32.totalorder %s186, 63
        %s188 = scalar_select %p187, %s186, 63
        %s189 = smul.addr %s188, 4
        %s190 = smul.addr %s189, 4
        %s191 = scalar_lea.vmem %s0, %s190
        %s192 = smul.u32 32, %s12
      $region28: #{gnn_encode.3} parent=23 // pred_fallthru
        _
      // Predicated region
      $region29: #{gnn_encode.3} parent=23 // pred_check
        %p193 = pneg %p79
      $region30: #{gnn_encode.3} parent=23 // pred_check_branch
        %195 = sbr.rel (%p193) target = $region32
      $region31: #{gnn_encode.3} parent=23 // pred_region
        %s196 = smul.u32 32, %s12
        %p197 = scmp.lt.s32.totalorder %s196, 63
        %s198 = scalar_select %p197, %s196, 63
        %s199 = smul.addr %s198, 8
        %s200 = scalar_lea.vmem %s2, %s199
        %s201 = smul.u32 32, %s12
      $region32: #{gnn_encode.3} parent=23 // pred_fallthru
        _
    $region24: #{gnn_encode.3} parent=5 // pred_fallthru
      _
    %p202 = scmp.le.s32.totalorder 1, %s12
    %p203 = scmp.lt.s32.totalorder %s12, 3
    %p204 = pnand %p202, %p203
    %p205 = pneg %p204
    // Predicated region
    $region33: #{gnn_encode.3} parent=5 // pred_check
      _
    $region34: #{gnn_encode.3} parent=5 // pred_check_branch
      %207 = sbr.rel (%p204) target = $region36
    $region35: #{gnn_encode.3} parent=5 // pred_region
      %s208 = ssub.s32 %s12, 1
      %s209 = smul.u32 32, %s17
      %p210 = scmp.lt.s32.totalorder %s209, 63
      %s211 = scalar_select %p210, %s209, 63
      %s212 = smul.addr %s211, 4
      %s213 = smul.addr %s212, 4
      %s214 = scalar_lea.vmem %s0, %s213
      %p215 = pneg %p38
      %p216 = pneg %p35
      %p217 = pneg %p59
      %p218 = pneg %p56
      %s219 = smul.u32 32, %s17
      %p220 = scmp.lt.s32.totalorder %s219, 63
      %s221 = scalar_select %p220, %s219, 63
      %s222 = smul.addr %s221, 8
      %s223 = scalar_lea.vmem %s2, %s222
      %p224 = pneg %p85
      %p225 = pneg %p82
      %p226 = pneg %p106
      %p227 = pneg %p103
      %p228 = pneg %p132
      %p229 = pneg %p129
      %s230 = smul.u32 32, %s17
      %p231 = scmp.lt.s32.totalorder %s230, 63
      %s232 = scalar_select %p231, %s230, 63
      %s233 = smul.addr %s232, 8
      %s234 = scalar_lea.vmem %s4, %s233
      %p235 = pneg %p158
      %p236 = pneg %p155
      %p237 = scmp.lt.s32.totalorder %s17, 1
      %s238 = scalar_select %p237, %s17, 1
      %s239 = scalar_lea.vmem %s5, %s238
      %s240 = smul.u32 32, %s17
      %p241 = scmp.lt.s32.totalorder %s240, 63
      %s242 = scalar_select %p241, %s240, 63
      %s243 = smul.addr %s242, 4
      %s244 = smul.addr %s243, 4
      %s245 = scalar_lea.vmem %s0, %s244
      %s246 = smul.u32 32, %s17
      %s247 = smul.u32 32, %s17
      %p248 = scmp.lt.s32.totalorder %s247, 63
      %s249 = scalar_select %p248, %s247, 63
      %s250 = smul.addr %s249, 8
      %s251 = scalar_lea.vmem %s2, %s250
      %s252 = smul.u32 32, %s17
      %s253 = smul.u32 32, %s17
      %p254 = scmp.lt.s32.totalorder %s253, 63
      %s255 = scalar_select %p254, %s253, 63
      %s256 = smul.addr %s255, 8
      %s257 = scalar_lea.vmem %s4, %s256
      %s258 = smul.u32 32, %s17
      %p259 = scmp.lt.s32.totalorder %s17, 1
      %s260 = scalar_select %p259, %s17, 1
      %s261 = scalar_lea.vmem %s5, %s260
      %v263 = vld [vmem:[%s245] sm:$0xff]
      %v264 = vld [vmem:[%s245 + $0x8] sm:$0xff]
      %v265 = vld [vmem:[%s245 + $0x10] sm:$0xff]
      %v266 = vld [vmem:[%s245 + $0x18] sm:$0xff]
      %v267 = vld [vmem:[%s245 + $0x20] sm:$0xff]
      %v268 = vld [vmem:[%s245 + $0x28] sm:$0xff]
      %v269 = vld [vmem:[%s245 + $0x30] sm:$0xff]
      %v270 = vld [vmem:[%s245 + $0x38] sm:$0xff]
      %v271 = vld [vmem:[%s245 + $0x40] sm:$0xff]
      %v272 = vld [vmem:[%s245 + $0x48] sm:$0xff]
      %v273 = vld [vmem:[%s245 + $0x50] sm:$0xff]
      %v274 = vld [vmem:[%s245 + $0x58] sm:$0xff]
      %v275 = vld [vmem:[%s245 + $0x60] sm:$0xff]
      %v276 = vld [vmem:[%s245 + $0x68] sm:$0xff]
      %v277 = vld [vmem:[%s245 + $0x70] sm:$0xff]
      %v278 = vld [vmem:[%s245 + $0x78] sm:$0xff]
      %v279 = vld [vmem:[%s245 + $0x80] sm:$0xff]
      %v280 = vld [vmem:[%s245 + $0x88] sm:$0xff]
      %v281 = vld [vmem:[%s245 + $0x90] sm:$0xff]
      %v282 = vld [vmem:[%s245 + $0x98] sm:$0xff]
      %v283 = vld [vmem:[%s245 + $0xa0] sm:$0xff]
      %v284 = vld [vmem:[%s245 + $0xa8] sm:$0xff]
      %v285 = vld [vmem:[%s245 + $0xb0] sm:$0xff]
      %v286 = vld [vmem:[%s245 + $0xb8] sm:$0xff]
      %v287 = vld [vmem:[%s245 + $0xc0] sm:$0xff]
      %v288 = vld [vmem:[%s245 + $0xc8] sm:$0xff]
      %v289 = vld [vmem:[%s245 + $0xd0] sm:$0xff]
      %v290 = vld [vmem:[%s245 + $0xd8] sm:$0xff]
      %v291 = vld [vmem:[%s245 + $0xe0] sm:$0xff]
      %v292 = vld [vmem:[%s245 + $0xe8] sm:$0xff]
      %v293 = vld [vmem:[%s245 + $0xf0] sm:$0xff]
      %v294 = vld [vmem:[%s245 + $0xf8] sm:$0xff]
      %v295 = vld [vmem:[%s245 + $0x100] sm:$0xff]
      %v296 = vld [vmem:[%s245 + $0x108] sm:$0xff]
      %v297 = vld [vmem:[%s245 + $0x110] sm:$0xff]
      %v298 = vld [vmem:[%s245 + $0x118] sm:$0xff]
      %v299 = vld [vmem:[%s245 + $0x120] sm:$0xff]
      %v300 = vld [vmem:[%s245 + $0x128] sm:$0xff]
      %v301 = vld [vmem:[%s245 + $0x130] sm:$0xff]
      %v302 = vld [vmem:[%s245 + $0x138] sm:$0xff]
      %v303 = vld [vmem:[%s245 + $0x140] sm:$0xff]
      %v304 = vld [vmem:[%s245 + $0x148] sm:$0xff]
      %v305 = vld [vmem:[%s245 + $0x150] sm:$0xff]
      %v306 = vld [vmem:[%s245 + $0x158] sm:$0xff]
      %v307 = vld [vmem:[%s245 + $0x160] sm:$0xff]
      %v308 = vld [vmem:[%s245 + $0x168] sm:$0xff]
      %v309 = vld [vmem:[%s245 + $0x170] sm:$0xff]
      %v310 = vld [vmem:[%s245 + $0x178] sm:$0xff]
      %v311 = vld [vmem:[%s245 + $0x180] sm:$0xff]
      %v312 = vld [vmem:[%s245 + $0x188] sm:$0xff]
      %v313 = vld [vmem:[%s245 + $0x190] sm:$0xff]
      %v314 = vld [vmem:[%s245 + $0x198] sm:$0xff]
      %v315 = vld [vmem:[%s245 + $0x1a0] sm:$0xff]
      %v316 = vld [vmem:[%s245 + $0x1a8] sm:$0xff]
      %v317 = vld [vmem:[%s245 + $0x1b0] sm:$0xff]
      %v318 = vld [vmem:[%s245 + $0x1b8] sm:$0xff]
      %v319 = vld [vmem:[%s245 + $0x1c0] sm:$0xff]
      %v320 = vld [vmem:[%s245 + $0x1c8] sm:$0xff]
      %v321 = vld [vmem:[%s245 + $0x1d0] sm:$0xff]
      %v322 = vld [vmem:[%s245 + $0x1d8] sm:$0xff]
      %v323 = vld [vmem:[%s245 + $0x1e0] sm:$0xff]
      %v324 = vld [vmem:[%s245 + $0x1e8] sm:$0xff]
      %v325 = vld [vmem:[%s245 + $0x1f0] sm:$0xff]
      %v326 = vld [vmem:[%s245 + $0x1f8] sm:$0xff]
      %v327 = vld [vmem:[%s1] sm:$0xf]
      %v328 = vld [vmem:[%s1 + $0x4] sm:$0xf]
      %v329 = vld [vmem:[%s1 + $0x8] sm:$0xf]
      %v330 = vld [vmem:[%s1 + $0xc] sm:$0xf]
      %v331 = vld [vmem:[%s1 + $0x10] sm:$0xf]
      %v332 = vld [vmem:[%s1 + $0x14] sm:$0xf]
      %v333 = vld [vmem:[%s1 + $0x18] sm:$0xf]
      %v334 = vld [vmem:[%s1 + $0x1c] sm:$0xf]
      %v335 = vld [vmem:[%s1 + $0x20] sm:$0xf]
      %v336 = vld [vmem:[%s1 + $0x24] sm:$0xf]
      %v337 = vld [vmem:[%s1 + $0x28] sm:$0xf]
      %v338 = vld [vmem:[%s1 + $0x2c] sm:$0xf]
      %v339 = vld [vmem:[%s1 + $0x30] sm:$0xf]
      %v340 = vld [vmem:[%s1 + $0x34] sm:$0xf]
      %v341 = vld [vmem:[%s1 + $0x38] sm:$0xf]
      %v342 = vld [vmem:[%s1 + $0x3c] sm:$0xf]
      %v343 = vld [vmem:[%s1 + $0x40] sm:$0xf]
      %v344 = vld [vmem:[%s1 + $0x44] sm:$0xf]
      %v345 = vld [vmem:[%s1 + $0x48] sm:$0xf]
      %v346 = vld [vmem:[%s1 + $0x4c] sm:$0xf]
      %v347 = vld [vmem:[%s1 + $0x50] sm:$0xf]
      %v348 = vld [vmem:[%s1 + $0x54] sm:$0xf]
      %v349 = vld [vmem:[%s1 + $0x58] sm:$0xf]
      %v350 = vld [vmem:[%s1 + $0x5c] sm:$0xf]
      %v351 = vld [vmem:[%s1 + $0x60] sm:$0xf]
      %v352 = vld [vmem:[%s1 + $0x64] sm:$0xf]
      %v353 = vld [vmem:[%s1 + $0x68] sm:$0xf]
      %v354 = vld [vmem:[%s1 + $0x6c] sm:$0xf]
      %v355 = vld [vmem:[%s1 + $0x70] sm:$0xf]
      %v356 = vld [vmem:[%s1 + $0x74] sm:$0xf]
      %v357 = vld [vmem:[%s1 + $0x78] sm:$0xf]
      %v358 = vld [vmem:[%s1 + $0x7c] sm:$0xf]
      %v359 = vld [vmem:[%s1 + $0x80] sm:$0xf]
      %v360 = vld [vmem:[%s1 + $0x84] sm:$0xf]
      %v361 = vld [vmem:[%s1 + $0x88] sm:$0xf]
      %v362 = vld [vmem:[%s1 + $0x8c] sm:$0xf]
      %v363 = vld [vmem:[%s1 + $0x90] sm:$0xf]
      %v364 = vld [vmem:[%s1 + $0x94] sm:$0xf]
      %v365 = vld [vmem:[%s1 + $0x98] sm:$0xf]
      %v366 = vld [vmem:[%s1 + $0x9c] sm:$0xf]
      %v367 = vld [vmem:[%s1 + $0xa0] sm:$0xf]
      %v368 = vld [vmem:[%s1 + $0xa4] sm:$0xf]
      %v369 = vld [vmem:[%s1 + $0xa8] sm:$0xf]
      %v370 = vld [vmem:[%s1 + $0xac] sm:$0xf]
      %v371 = vld [vmem:[%s1 + $0xb0] sm:$0xf]
      %v372 = vld [vmem:[%s1 + $0xb4] sm:$0xf]
      %v373 = vld [vmem:[%s1 + $0xb8] sm:$0xf]
      %v374 = vld [vmem:[%s1 + $0xbc] sm:$0xf]
      %v375 = vld [vmem:[%s1 + $0xc0] sm:$0xf]
      %v376 = vld [vmem:[%s1 + $0xc4] sm:$0xf]
      %v377 = vld [vmem:[%s1 + $0xc8] sm:$0xf]
      %v378 = vld [vmem:[%s1 + $0xcc] sm:$0xf]
      %v379 = vld [vmem:[%s1 + $0xd0] sm:$0xf]
      %v380 = vld [vmem:[%s1 + $0xd4] sm:$0xf]
      %v381 = vld [vmem:[%s1 + $0xd8] sm:$0xf]
      %v382 = vld [vmem:[%s1 + $0xdc] sm:$0xf]
      %v383 = vld [vmem:[%s1 + $0xe0] sm:$0xf]
      %v384 = vld [vmem:[%s1 + $0xe4] sm:$0xf]
      %v385 = vld [vmem:[%s1 + $0xe8] sm:$0xf]
      %v386 = vld [vmem:[%s1 + $0xec] sm:$0xf]
      %v387 = vld [vmem:[%s1 + $0xf0] sm:$0xf]
      %v388 = vld [vmem:[%s1 + $0xf4] sm:$0xf]
      %v389 = vld [vmem:[%s1 + $0xf8] sm:$0xf]
      %v390 = vld [vmem:[%s1 + $0xfc] sm:$0xf]
      %s391 = smul.u32 %s17, 256
      %s392 = sshra.s32 %s391, 3
      %s393 = sand.u32 %s391, 7
      %s394 = smul.addr %s392, 4
      %s395 = scalar_lea.vmem %s1, %s394
      %v396 = vld [vmem:[%s395] sm:$0xf]
      %v397 = vld [vmem:[%s395 + $0x4] sm:$0xf]
      %v398 = vld [vmem:[%s395 + $0x8] sm:$0xf]
      %v399 = vld [vmem:[%s395 + $0xc] sm:$0xf]
      %v400 = vld [vmem:[%s395 + $0x10] sm:$0xf]
      %v401 = vld [vmem:[%s395 + $0x14] sm:$0xf]
      %v402 = vld [vmem:[%s395 + $0x18] sm:$0xf]
      %v403 = vld [vmem:[%s395 + $0x1c] sm:$0xf]
      %v404 = vld [vmem:[%s395 + $0x20] sm:$0xf]
      %v405 = vld [vmem:[%s395 + $0x24] sm:$0xf]
      %v406 = vld [vmem:[%s395 + $0x28] sm:$0xf]
      %v407 = vld [vmem:[%s395 + $0x2c] sm:$0xf]
      %v408 = vld [vmem:[%s395 + $0x30] sm:$0xf]
      %v409 = vld [vmem:[%s395 + $0x34] sm:$0xf]
      %v410 = vld [vmem:[%s395 + $0x38] sm:$0xf]
      %v411 = vld [vmem:[%s395 + $0x3c] sm:$0xf]
      %v412 = vld [vmem:[%s395 + $0x40] sm:$0xf]
      %v413 = vld [vmem:[%s395 + $0x44] sm:$0xf]
      %v414 = vld [vmem:[%s395 + $0x48] sm:$0xf]
      %v415 = vld [vmem:[%s395 + $0x4c] sm:$0xf]
      %v416 = vld [vmem:[%s395 + $0x50] sm:$0xf]
      %v417 = vld [vmem:[%s395 + $0x54] sm:$0xf]
      %v418 = vld [vmem:[%s395 + $0x58] sm:$0xf]
      %v419 = vld [vmem:[%s395 + $0x5c] sm:$0xf]
      %v420 = vld [vmem:[%s395 + $0x60] sm:$0xf]
      %v421 = vld [vmem:[%s395 + $0x64] sm:$0xf]
      %v422 = vld [vmem:[%s395 + $0x68] sm:$0xf]
      %v423 = vld [vmem:[%s395 + $0x6c] sm:$0xf]
      %v424 = vld [vmem:[%s395 + $0x70] sm:$0xf]
      %v425 = vld [vmem:[%s395 + $0x74] sm:$0xf]
      %v426 = vld [vmem:[%s395 + $0x78] sm:$0xf]
      %v427 = vld [vmem:[%s395 + $0x7c] sm:$0xf]
      %v428 = vunpack.c.l.bf16 %v396
      %v429 = vunpack.c.l.bf16 %v397
      %v430 = vunpack.c.l.bf16 %v398
      %v431 = vunpack.c.l.bf16 %v399
      %v432 = vunpack.c.l.bf16 %v400
      %v433 = vunpack.c.l.bf16 %v401
      %v434 = vunpack.c.l.bf16 %v402
      %v435 = vunpack.c.l.bf16 %v403
      %v436 = vunpack.c.l.bf16 %v404
      %v437 = vunpack.c.l.bf16 %v405
      %v438 = vunpack.c.l.bf16 %v406
      %v439 = vunpack.c.l.bf16 %v407
      %v440 = vunpack.c.l.bf16 %v408
      %v441 = vunpack.c.l.bf16 %v409
      %v442 = vunpack.c.l.bf16 %v410
      %v443 = vunpack.c.l.bf16 %v411
      %v444 = vunpack.c.l.bf16 %v412
      %v445 = vunpack.c.l.bf16 %v413
      %v446 = vunpack.c.l.bf16 %v414
      %v447 = vunpack.c.l.bf16 %v415
      %v448 = vunpack.c.l.bf16 %v416
      %v449 = vunpack.c.l.bf16 %v417
      %v450 = vunpack.c.l.bf16 %v418
      %v451 = vunpack.c.l.bf16 %v419
      %v452 = vunpack.c.l.bf16 %v420
      %v453 = vunpack.c.l.bf16 %v421
      %v454 = vunpack.c.l.bf16 %v422
      %v455 = vunpack.c.l.bf16 %v423
      %v456 = vunpack.c.l.bf16 %v424
      %v457 = vunpack.c.l.bf16 %v425
      %v458 = vunpack.c.l.bf16 %v426
      %v459 = vunpack.c.l.bf16 %v427
      %v524 = vunpack.c.l.b16 %v263
      %v525 = vunpack.c.h.b16 %v263
      %v526 = vunpack.c.l.b16 %v264
      %v527 = vunpack.c.h.b16 %v264
      %v528 = vunpack.c.l.b16 %v265
      %v529 = vunpack.c.h.b16 %v265
      %v530 = vunpack.c.l.b16 %v266
      %v531 = vunpack.c.h.b16 %v266
      %v532 = vunpack.c.l.b16 %v267
      %v533 = vunpack.c.h.b16 %v267
      %v534 = vunpack.c.l.b16 %v268
      %v535 = vunpack.c.h.b16 %v268
      %v536 = vunpack.c.l.b16 %v269
      %v537 = vunpack.c.h.b16 %v269
      %v538 = vunpack.c.l.b16 %v270
      %v539 = vunpack.c.h.b16 %v270
      %v540 = vunpack.c.l.b16 %v271
      %v541 = vunpack.c.h.b16 %v271
      %v542 = vunpack.c.l.b16 %v272
      %v543 = vunpack.c.h.b16 %v272
      %v544 = vunpack.c.l.b16 %v273
      %v545 = vunpack.c.h.b16 %v273
      %v546 = vunpack.c.l.b16 %v274
      %v547 = vunpack.c.h.b16 %v274
      %v548 = vunpack.c.l.b16 %v275
      %v549 = vunpack.c.h.b16 %v275
      %v550 = vunpack.c.l.b16 %v276
      %v551 = vunpack.c.h.b16 %v276
      %v552 = vunpack.c.l.b16 %v277
      %v553 = vunpack.c.h.b16 %v277
      %v554 = vunpack.c.l.b16 %v278
      %v555 = vunpack.c.h.b16 %v278
      %v556 = vunpack.c.l.b16 %v279
      %v557 = vunpack.c.h.b16 %v279
      %v558 = vunpack.c.l.b16 %v280
      %v559 = vunpack.c.h.b16 %v280
      %v560 = vunpack.c.l.b16 %v281
      %v561 = vunpack.c.h.b16 %v281
      %v562 = vunpack.c.l.b16 %v282
      %v563 = vunpack.c.h.b16 %v282
      %v564 = vunpack.c.l.b16 %v283
      %v565 = vunpack.c.h.b16 %v283
      %v566 = vunpack.c.l.b16 %v284
      %v567 = vunpack.c.h.b16 %v284
      %v568 = vunpack.c.l.b16 %v285
      %v569 = vunpack.c.h.b16 %v285
      %v570 = vunpack.c.l.b16 %v286
      %v571 = vunpack.c.h.b16 %v286
      %v572 = vunpack.c.l.b16 %v287
      %v573 = vunpack.c.h.b16 %v287
      %v574 = vunpack.c.l.b16 %v288
      %v575 = vunpack.c.h.b16 %v288
      %v576 = vunpack.c.l.b16 %v289
      %v577 = vunpack.c.h.b16 %v289
      %v578 = vunpack.c.l.b16 %v290
      %v579 = vunpack.c.h.b16 %v290
      %v580 = vunpack.c.l.b16 %v291
      %v581 = vunpack.c.h.b16 %v291
      %v582 = vunpack.c.l.b16 %v292
      %v583 = vunpack.c.h.b16 %v292
      %v584 = vunpack.c.l.b16 %v293
      %v585 = vunpack.c.h.b16 %v293
      %v586 = vunpack.c.l.b16 %v294
      %v587 = vunpack.c.h.b16 %v294
      %v588 = vunpack.c.l.b16 %v295
      %v589 = vunpack.c.h.b16 %v295
      %v590 = vunpack.c.l.b16 %v296
      %v591 = vunpack.c.h.b16 %v296
      %v592 = vunpack.c.l.b16 %v297
      %v593 = vunpack.c.h.b16 %v297
      %v594 = vunpack.c.l.b16 %v298
      %v595 = vunpack.c.h.b16 %v298
      %v596 = vunpack.c.l.b16 %v299
      %v597 = vunpack.c.h.b16 %v299
      %v598 = vunpack.c.l.b16 %v300
      %v599 = vunpack.c.h.b16 %v300
      %v600 = vunpack.c.l.b16 %v301
      %v601 = vunpack.c.h.b16 %v301
      %v602 = vunpack.c.l.b16 %v302
      %v603 = vunpack.c.h.b16 %v302
      %v604 = vunpack.c.l.b16 %v303
      %v605 = vunpack.c.h.b16 %v303
      %v606 = vunpack.c.l.b16 %v304
      %v607 = vunpack.c.h.b16 %v304
      %v608 = vunpack.c.l.b16 %v305
      %v609 = vunpack.c.h.b16 %v305
      %v610 = vunpack.c.l.b16 %v306
      %v611 = vunpack.c.h.b16 %v306
      %v612 = vunpack.c.l.b16 %v307
      %v613 = vunpack.c.h.b16 %v307
      %v614 = vunpack.c.l.b16 %v308
      %v615 = vunpack.c.h.b16 %v308
      %v616 = vunpack.c.l.b16 %v309
      %v617 = vunpack.c.h.b16 %v309
      %v618 = vunpack.c.l.b16 %v310
      %v619 = vunpack.c.h.b16 %v310
      %v620 = vunpack.c.l.b16 %v311
      %v621 = vunpack.c.h.b16 %v311
      %v622 = vunpack.c.l.b16 %v312
      %v623 = vunpack.c.h.b16 %v312
      %v624 = vunpack.c.l.b16 %v313
      %v625 = vunpack.c.h.b16 %v313
      %v626 = vunpack.c.l.b16 %v314
      %v627 = vunpack.c.h.b16 %v314
      %v628 = vunpack.c.l.b16 %v315
      %v629 = vunpack.c.h.b16 %v315
      %v630 = vunpack.c.l.b16 %v316
      %v631 = vunpack.c.h.b16 %v316
      %v632 = vunpack.c.l.b16 %v317
      %v633 = vunpack.c.h.b16 %v317
      %v634 = vunpack.c.l.b16 %v318
      %v635 = vunpack.c.h.b16 %v318
      %v636 = vunpack.c.l.b16 %v319
      %v637 = vunpack.c.h.b16 %v319
      %v638 = vunpack.c.l.b16 %v320
      %v639 = vunpack.c.h.b16 %v320
      %v640 = vunpack.c.l.b16 %v321
      %v641 = vunpack.c.h.b16 %v321
      %v642 = vunpack.c.l.b16 %v322
      %v643 = vunpack.c.h.b16 %v322
      %v644 = vunpack.c.l.b16 %v323
      %v645 = vunpack.c.h.b16 %v323
      %v646 = vunpack.c.l.b16 %v324
      %v647 = vunpack.c.h.b16 %v324
      %v648 = vunpack.c.l.b16 %v325
      %v649 = vunpack.c.h.b16 %v325
      %v650 = vunpack.c.l.b16 %v326
      %v651 = vunpack.c.h.b16 %v326
      %v652 = vpack.c.b16 %v528, %v524
      %v653 = vpack.c.b16 %v529, %v525
      %v654 = vpack.c.b16 %v530, %v526
      %v655 = vpack.c.b16 %v531, %v527
      %v656 = vpack.c.b16 %v536, %v532
      %v657 = vpack.c.b16 %v537, %v533
      %v658 = vpack.c.b16 %v538, %v534
      %v659 = vpack.c.b16 %v539, %v535
      %v660 = vpack.c.b16 %v544, %v540
      %v661 = vpack.c.b16 %v545, %v541
      %v662 = vpack.c.b16 %v546, %v542
      %v663 = vpack.c.b16 %v547, %v543
      %v664 = vpack.c.b16 %v552, %v548
      %v665 = vpack.c.b16 %v553, %v549
      %v666 = vpack.c.b16 %v554, %v550
      %v667 = vpack.c.b16 %v555, %v551
      %v668 = vpack.c.b16 %v560, %v556
      %v669 = vpack.c.b16 %v561, %v557
      %v670 = vpack.c.b16 %v562, %v558
      %v671 = vpack.c.b16 %v563, %v559
      %v672 = vpack.c.b16 %v568, %v564
      %v673 = vpack.c.b16 %v569, %v565
      %v674 = vpack.c.b16 %v570, %v566
      %v675 = vpack.c.b16 %v571, %v567
      %v676 = vpack.c.b16 %v576, %v572
      %v677 = vpack.c.b16 %v577, %v573
      %v678 = vpack.c.b16 %v578, %v574
      %v679 = vpack.c.b16 %v579, %v575
      %v680 = vpack.c.b16 %v584, %v580
      %v681 = vpack.c.b16 %v585, %v581
      %v682 = vpack.c.b16 %v586, %v582
      %v683 = vpack.c.b16 %v587, %v583
      %v684 = vpack.c.b16 %v592, %v588
      %v685 = vpack.c.b16 %v593, %v589
      %v686 = vpack.c.b16 %v594, %v590
      %v687 = vpack.c.b16 %v595, %v591
      %v688 = vpack.c.b16 %v600, %v596
      %v689 = vpack.c.b16 %v601, %v597
      %v690 = vpack.c.b16 %v602, %v598
      %v691 = vpack.c.b16 %v603, %v599
      %v692 = vpack.c.b16 %v608, %v604
      %v693 = vpack.c.b16 %v609, %v605
      %v694 = vpack.c.b16 %v610, %v606
      %v695 = vpack.c.b16 %v611, %v607
      %v696 = vpack.c.b16 %v616, %v612
      %v697 = vpack.c.b16 %v617, %v613
      %v698 = vpack.c.b16 %v618, %v614
      %v699 = vpack.c.b16 %v619, %v615
      %v700 = vpack.c.b16 %v624, %v620
      %v701 = vpack.c.b16 %v625, %v621
      %v702 = vpack.c.b16 %v626, %v622
      %v703 = vpack.c.b16 %v627, %v623
      %v704 = vpack.c.b16 %v632, %v628
      %v705 = vpack.c.b16 %v633, %v629
      %v706 = vpack.c.b16 %v634, %v630
      %v707 = vpack.c.b16 %v635, %v631
      %v708 = vpack.c.b16 %v640, %v636
      %v709 = vpack.c.b16 %v641, %v637
      %v710 = vpack.c.b16 %v642, %v638
      %v711 = vpack.c.b16 %v643, %v639
      %v712 = vpack.c.b16 %v648, %v644
      %v713 = vpack.c.b16 %v649, %v645
      %v714 = vpack.c.b16 %v650, %v646
      %v715 = vpack.c.b16 %v651, %v647
      %v844 = vunpack.c.l.b16 %v327
      %v845 = vunpack.c.l.b16 %v328
      %v846 = vunpack.c.l.b16 %v329
      %v847 = vunpack.c.l.b16 %v330
      %v848 = vunpack.c.l.b16 %v331
      %v849 = vunpack.c.l.b16 %v332
      %v850 = vunpack.c.l.b16 %v333
      %v851 = vunpack.c.l.b16 %v334
      %v852 = vunpack.c.l.b16 %v335
      %v853 = vunpack.c.l.b16 %v336
      %v854 = vunpack.c.l.b16 %v337
      %v855 = vunpack.c.l.b16 %v338
      %v856 = vunpack.c.l.b16 %v339
      %v857 = vunpack.c.l.b16 %v340
      %v858 = vunpack.c.l.b16 %v341
      %v859 = vunpack.c.l.b16 %v342
      %v860 = vunpack.c.l.b16 %v343
      %v861 = vunpack.c.l.b16 %v344
      %v862 = vunpack.c.l.b16 %v345
      %v863 = vunpack.c.l.b16 %v346
      %v864 = vunpack.c.l.b16 %v347
      %v865 = vunpack.c.l.b16 %v348
      %v866 = vunpack.c.l.b16 %v349
      %v867 = vunpack.c.l.b16 %v350
      %v868 = vunpack.c.l.b16 %v351
      %v869 = vunpack.c.l.b16 %v352
      %v870 = vunpack.c.l.b16 %v353
      %v871 = vunpack.c.l.b16 %v354
      %v872 = vunpack.c.l.b16 %v355
      %v873 = vunpack.c.l.b16 %v356
      %v874 = vunpack.c.l.b16 %v357
      %v875 = vunpack.c.l.b16 %v358
      %v876 = vunpack.c.l.b16 %v359
      %v877 = vunpack.c.l.b16 %v360
      %v878 = vunpack.c.l.b16 %v361
      %v879 = vunpack.c.l.b16 %v362
      %v880 = vunpack.c.l.b16 %v363
      %v881 = vunpack.c.l.b16 %v364
      %v882 = vunpack.c.l.b16 %v365
      %v883 = vunpack.c.l.b16 %v366
      %v884 = vunpack.c.l.b16 %v367
      %v885 = vunpack.c.l.b16 %v368
      %v886 = vunpack.c.l.b16 %v369
      %v887 = vunpack.c.l.b16 %v370
      %v888 = vunpack.c.l.b16 %v371
      %v889 = vunpack.c.l.b16 %v372
      %v890 = vunpack.c.l.b16 %v373
      %v891 = vunpack.c.l.b16 %v374
      %v892 = vunpack.c.l.b16 %v375
      %v893 = vunpack.c.l.b16 %v376
      %v894 = vunpack.c.l.b16 %v377
      %v895 = vunpack.c.l.b16 %v378
      %v896 = vunpack.c.l.b16 %v379
      %v897 = vunpack.c.l.b16 %v380
      %v898 = vunpack.c.l.b16 %v381
      %v899 = vunpack.c.l.b16 %v382
      %v900 = vunpack.c.l.b16 %v383
      %v901 = vunpack.c.l.b16 %v384
      %v902 = vunpack.c.l.b16 %v385
      %v903 = vunpack.c.l.b16 %v386
      %v904 = vunpack.c.l.b16 %v387
      %v905 = vunpack.c.l.b16 %v388
      %v906 = vunpack.c.l.b16 %v389
      %v907 = vunpack.c.l.b16 %v390
      %v908 = vpack.c.b16 %v845, %v844
      %v909 = vpack.c.b16 %v847, %v846
      %v910 = vpack.c.b16 %v849, %v848
      %v911 = vpack.c.b16 %v851, %v850
      %v912 = vpack.c.b16 %v853, %v852
      %v913 = vpack.c.b16 %v855, %v854
      %v914 = vpack.c.b16 %v857, %v856
      %v915 = vpack.c.b16 %v859, %v858
      %v916 = vpack.c.b16 %v861, %v860
      %v917 = vpack.c.b16 %v863, %v862
      %v918 = vpack.c.b16 %v865, %v864
      %v919 = vpack.c.b16 %v867, %v866
      %v920 = vpack.c.b16 %v869, %v868
      %v921 = vpack.c.b16 %v871, %v870
      %v922 = vpack.c.b16 %v873, %v872
      %v923 = vpack.c.b16 %v875, %v874
      %v924 = vpack.c.b16 %v877, %v876
      %v925 = vpack.c.b16 %v879, %v878
      %v926 = vpack.c.b16 %v881, %v880
      %v927 = vpack.c.b16 %v883, %v882
      %v928 = vpack.c.b16 %v885, %v884
      %v929 = vpack.c.b16 %v887, %v886
      %v930 = vpack.c.b16 %v889, %v888
      %v931 = vpack.c.b16 %v891, %v890
      %v932 = vpack.c.b16 %v893, %v892
      %v933 = vpack.c.b16 %v895, %v894
      %v934 = vpack.c.b16 %v897, %v896
      %v935 = vpack.c.b16 %v899, %v898
      %v936 = vpack.c.b16 %v901, %v900
      %v937 = vpack.c.b16 %v903, %v902
      %v938 = vpack.c.b16 %v905, %v904
      %v939 = vpack.c.b16 %v907, %v906
      %972 = vmatprep.subr.bf16.mxu0 0
      %973 = vmatpush1.bf16.msra.mxu0 %v915
      %974 = vmatprep.subr.bf16.mxu0 0
      %975 = vmatpush1.bf16.msra.mxu0 %v914
      %976 = vmatprep.subr.bf16.mxu0 0
      %977 = vmatpush1.bf16.msra.mxu0 %v913
      %978 = vmatprep.subr.bf16.mxu0 0
      %979 = vmatpush1.bf16.msra.mxu0 %v912
      %980 = vmatprep.subr.bf16.mxu0 0
      %981 = vmatpush1.bf16.msra.mxu0 %v911
      %982 = vmatprep.subr.bf16.mxu0 0
      %983 = vmatpush1.bf16.msra.mxu0 %v910
      %984 = vmatprep.subr.bf16.mxu0 0
      %985 = vmatpush1.bf16.msra.mxu0 %v909
      %986 = vmatprep.subr.bf16.mxu0 0
      %987 = vmatpush1.bf16.msra.mxu0 %v908
      %988 = vmatprep.subr.bf16.mxu0 0
      %989 = vmatpush2.bf16.msra.mxu0 %v923
      %990 = vmatprep.subr.bf16.mxu0 0
      %991 = vmatpush2.bf16.msra.mxu0 %v922
      %992 = vmatprep.subr.bf16.mxu0 0
      %993 = vmatpush2.bf16.msra.mxu0 %v921
      %994 = vmatprep.subr.bf16.mxu0 0
      %995 = vmatpush2.bf16.msra.mxu0 %v920
      %996 = vmatprep.subr.bf16.mxu0 0
      %997 = vmatpush2.bf16.msra.mxu0 %v919
      %998 = vmatprep.subr.bf16.mxu0 0
      %999 = vmatpush2.bf16.msra.mxu0 %v918
      %1000 = vmatprep.subr.bf16.mxu0 0
      %1001 = vmatpush2.bf16.msra.mxu0 %v917
      %1002 = vmatprep.subr.bf16.mxu0 0
      %1003 = vmatpush2.bf16.msra.mxu0 %v916
      %1004 = vmatprep.mubr.bf16.mxu0 %v653
      %1005 = vmatmul.mubr.bf16.gmra.mxu0 %v652
      %v1006 = vpop.f32.mrf.mxu0
      %v1007 = vadd.f32 %v428, %v1006
      %v1008 = vpop.f32.mrf.mxu0
      %v1009 = vpop.f32.mrf.mxu0
      %v1010 = vadd.f32 %v429, %v1009
      %v1011 = vpop.f32.mrf.mxu0
      %1012 = vmatprep.mubr.bf16.mxu0 %v657
      %1013 = vmatmul.mubr.bf16.gmra.mxu0 %v656
      %v1014 = vpop.f32.mrf.mxu0
      %v1015 = vadd.f32 %v430, %v1014
      %v1016 = vpop.f32.mrf.mxu0
      %v1017 = vpop.f32.mrf.mxu0
      %v1018 = vadd.f32 %v431, %v1017
      %v1019 = vpop.f32.mrf.mxu0
      %1020 = vmatprep.mubr.bf16.mxu0 %v661
      %1021 = vmatmul.mubr.bf16.gmra.mxu0 %v660
      %v1022 = vpop.f32.mrf.mxu0
      %v1023 = vadd.f32 %v432, %v1022
      %v1024 = vpop.f32.mrf.mxu0
      %v1025 = vpop.f32.mrf.mxu0
      %v1026 = vadd.f32 %v433, %v1025
      %v1027 = vpop.f32.mrf.mxu0
      %1028 = vmatprep.mubr.bf16.mxu0 %v665
      %1029 = vmatmul.mubr.bf16.gmra.mxu0 %v664
      %v1030 = vpop.f32.mrf.mxu0
      %v1031 = vadd.f32 %v434, %v1030
      %v1032 = vpop.f32.mrf.mxu0
      %v1033 = vpop.f32.mrf.mxu0
      %v1034 = vadd.f32 %v435, %v1033
      %v1035 = vpop.f32.mrf.mxu0
      %1036 = vmatprep.mubr.bf16.mxu0 %v669
      %1037 = vmatmul.mubr.bf16.gmra.mxu0 %v668
      %v1038 = vpop.f32.mrf.mxu0
      %v1039 = vadd.f32 %v436, %v1038
      %v1040 = vpop.f32.mrf.mxu0
      %v1041 = vpop.f32.mrf.mxu0
      %v1042 = vadd.f32 %v437, %v1041
      %v1043 = vpop.f32.mrf.mxu0
      %1044 = vmatprep.mubr.bf16.mxu0 %v673
      %1045 = vmatmul.mubr.bf16.gmra.mxu0 %v672
      %v1046 = vpop.f32.mrf.mxu0
      %v1047 = vadd.f32 %v438, %v1046
      %v1048 = vpop.f32.mrf.mxu0
      %v1049 = vpop.f32.mrf.mxu0
      %v1050 = vadd.f32 %v439, %v1049
      %v1051 = vpop.f32.mrf.mxu0
      %1052 = vmatprep.mubr.bf16.mxu0 %v677
      %1053 = vmatmul.mubr.bf16.gmra.mxu0 %v676
      %v1054 = vpop.f32.mrf.mxu0
      %v1055 = vadd.f32 %v440, %v1054
      %v1056 = vpop.f32.mrf.mxu0
      %v1057 = vpop.f32.mrf.mxu0
      %v1058 = vadd.f32 %v441, %v1057
      %v1059 = vpop.f32.mrf.mxu0
      %1060 = vmatprep.mubr.bf16.mxu0 %v681
      %1061 = vmatmul.mubr.bf16.gmra.mxu0 %v680
      %v1062 = vpop.f32.mrf.mxu0
      %v1063 = vadd.f32 %v442, %v1062
      %v1064 = vpop.f32.mrf.mxu0
      %v1065 = vpop.f32.mrf.mxu0
      %v1066 = vadd.f32 %v443, %v1065
      %v1067 = vpop.f32.mrf.mxu0
      %1068 = vmatprep.mubr.bf16.mxu0 %v685
      %1069 = vmatmul.mubr.bf16.gmra.mxu0 %v684
      %v1070 = vpop.f32.mrf.mxu0
      %v1071 = vadd.f32 %v444, %v1070
      %v1072 = vpop.f32.mrf.mxu0
      %v1073 = vpop.f32.mrf.mxu0
      %v1074 = vadd.f32 %v445, %v1073
      %v1075 = vpop.f32.mrf.mxu0
      %1076 = vmatprep.mubr.bf16.mxu0 %v689
      %1077 = vmatmul.mubr.bf16.gmra.mxu0 %v688
      %v1078 = vpop.f32.mrf.mxu0
      %v1079 = vadd.f32 %v446, %v1078
      %v1080 = vpop.f32.mrf.mxu0
      %v1081 = vpop.f32.mrf.mxu0
      %v1082 = vadd.f32 %v447, %v1081
      %v1083 = vpop.f32.mrf.mxu0
      %1084 = vmatprep.mubr.bf16.mxu0 %v693
      %1085 = vmatmul.mubr.bf16.gmra.mxu0 %v692
      %v1086 = vpop.f32.mrf.mxu0
      %v1087 = vadd.f32 %v448, %v1086
      %v1088 = vpop.f32.mrf.mxu0
      %v1089 = vpop.f32.mrf.mxu0
      %v1090 = vadd.f32 %v449, %v1089
      %v1091 = vpop.f32.mrf.mxu0
      %1092 = vmatprep.mubr.bf16.mxu0 %v697
      %1093 = vmatmul.mubr.bf16.gmra.mxu0 %v696
      %v1094 = vpop.f32.mrf.mxu0
      %v1095 = vadd.f32 %v450, %v1094
      %v1096 = vpop.f32.mrf.mxu0
      %v1097 = vpop.f32.mrf.mxu0
      %v1098 = vadd.f32 %v451, %v1097
      %v1099 = vpop.f32.mrf.mxu0
      %1100 = vmatprep.mubr.bf16.mxu0 %v701
      %1101 = vmatmul.mubr.bf16.gmra.mxu0 %v700
      %v1102 = vpop.f32.mrf.mxu0
      %v1103 = vadd.f32 %v452, %v1102
      %v1104 = vpop.f32.mrf.mxu0
      %v1105 = vpop.f32.mrf.mxu0
      %v1106 = vadd.f32 %v453, %v1105
      %v1107 = vpop.f32.mrf.mxu0
      %1108 = vmatprep.mubr.bf16.mxu0 %v705
      %1109 = vmatmul.mubr.bf16.gmra.mxu0 %v704
      %v1110 = vpop.f32.mrf.mxu0
      %v1111 = vadd.f32 %v454, %v1110
      %v1112 = vpop.f32.mrf.mxu0
      %v1113 = vpop.f32.mrf.mxu0
      %v1114 = vadd.f32 %v455, %v1113
      %v1115 = vpop.f32.mrf.mxu0
      %1116 = vmatprep.mubr.bf16.mxu0 %v709
      %1117 = vmatmul.mubr.bf16.gmra.mxu0 %v708
      %v1118 = vpop.f32.mrf.mxu0
      %v1119 = vadd.f32 %v456, %v1118
      %v1120 = vpop.f32.mrf.mxu0
      %v1121 = vpop.f32.mrf.mxu0
      %v1122 = vadd.f32 %v457, %v1121
      %v1123 = vpop.f32.mrf.mxu0
      %1124 = vmatprep.mubr.bf16.mxu0 %v713
      %1125 = vmatmul.mubr.bf16.gmra.mxu0 %v712
      %v1126 = vpop.f32.mrf.mxu0
      %v1127 = vadd.f32 %v458, %v1126
      %v1128 = vpop.f32.mrf.mxu0
      %v1129 = vpop.f32.mrf.mxu0
      %v1130 = vadd.f32 %v459, %v1129
      %v1131 = vpop.f32.mrf.mxu0
      %1132 = vdwg.mxu0
      %1133 = vmatprep.subr.bf16.mxu0 0
      %1134 = vmatpush1.bf16.msra.mxu0 %v931
      %1135 = vmatprep.subr.bf16.mxu0 0
      %1136 = vmatpush1.bf16.msra.mxu0 %v930
      %1137 = vmatprep.subr.bf16.mxu0 0
      %1138 = vmatpush1.bf16.msra.mxu0 %v929
      %1139 = vmatprep.subr.bf16.mxu0 0
      %1140 = vmatpush1.bf16.msra.mxu0 %v928
      %1141 = vmatprep.subr.bf16.mxu0 0
      %1142 = vmatpush1.bf16.msra.mxu0 %v927
      %1143 = vmatprep.subr.bf16.mxu0 0
      %1144 = vmatpush1.bf16.msra.mxu0 %v926
      %1145 = vmatprep.subr.bf16.mxu0 0
      %1146 = vmatpush1.bf16.msra.mxu0 %v925
      %1147 = vmatprep.subr.bf16.mxu0 0
      %1148 = vmatpush1.bf16.msra.mxu0 %v924
      %1149 = vmatprep.subr.bf16.mxu0 0
      %1150 = vmatpush2.bf16.msra.mxu0 %v939
      %1151 = vmatprep.subr.bf16.mxu0 0
      %1152 = vmatpush2.bf16.msra.mxu0 %v938
      %1153 = vmatprep.subr.bf16.mxu0 0
      %1154 = vmatpush2.bf16.msra.mxu0 %v937
      %1155 = vmatprep.subr.bf16.mxu0 0
      %1156 = vmatpush2.bf16.msra.mxu0 %v936
      %1157 = vmatprep.subr.bf16.mxu0 0
      %1158 = vmatpush2.bf16.msra.mxu0 %v935
      %1159 = vmatprep.subr.bf16.mxu0 0
      %1160 = vmatpush2.bf16.msra.mxu0 %v934
      %1161 = vmatprep.subr.bf16.mxu0 0
      %1162 = vmatpush2.bf16.msra.mxu0 %v933
      %1163 = vmatprep.subr.bf16.mxu0 0
      %1164 = vmatpush2.bf16.msra.mxu0 %v932
      %1165 = vmatprep.mubr.bf16.mxu0 %v655
      %1166 = vmatmul.mubr.bf16.gmra.mxu0 %v654
      %v1167 = vpop.f32.mrf.mxu0
      %v1168 = vadd.f32 %v1007, %v1167
      %v1169 = vpop.f32.mrf.mxu0
      %v1170 = vpop.f32.mrf.mxu0
      %v1171 = vadd.f32 %v1010, %v1170
      %v1172 = vpop.f32.mrf.mxu0
      %1173 = vmatprep.mubr.bf16.mxu0 %v659
      %1174 = vmatmul.mubr.bf16.gmra.mxu0 %v658
      %v1175 = vpop.f32.mrf.mxu0
      %v1176 = vadd.f32 %v1015, %v1175
      %v1177 = vpop.f32.mrf.mxu0
      %v1178 = vpop.f32.mrf.mxu0
      %v1179 = vadd.f32 %v1018, %v1178
      %v1180 = vpop.f32.mrf.mxu0
      %1181 = vmatprep.mubr.bf16.mxu0 %v663
      %1182 = vmatmul.mubr.bf16.gmra.mxu0 %v662
      %v1183 = vpop.f32.mrf.mxu0
      %v1184 = vadd.f32 %v1023, %v1183
      %v1185 = vpop.f32.mrf.mxu0
      %v1186 = vpop.f32.mrf.mxu0
      %v1187 = vadd.f32 %v1026, %v1186
      %v1188 = vpop.f32.mrf.mxu0
      %1189 = vmatprep.mubr.bf16.mxu0 %v667
      %1190 = vmatmul.mubr.bf16.gmra.mxu0 %v666
      %v1191 = vpop.f32.mrf.mxu0
      %v1192 = vadd.f32 %v1031, %v1191
      %v1193 = vpop.f32.mrf.mxu0
      %v1194 = vpop.f32.mrf.mxu0
      %v1195 = vadd.f32 %v1034, %v1194
      %v1196 = vpop.f32.mrf.mxu0
      %1197 = vmatprep.mubr.bf16.mxu0 %v671
      %1198 = vmatmul.mubr.bf16.gmra.mxu0 %v670
      %v1199 = vpop.f32.mrf.mxu0
      %v1200 = vadd.f32 %v1039, %v1199
      %v1201 = vpop.f32.mrf.mxu0
      %v1202 = vpop.f32.mrf.mxu0
      %v1203 = vadd.f32 %v1042, %v1202
      %v1204 = vpop.f32.mrf.mxu0
      %1205 = vmatprep.mubr.bf16.mxu0 %v675
      %1206 = vmatmul.mubr.bf16.gmra.mxu0 %v674
      %v1207 = vpop.f32.mrf.mxu0
      %v1208 = vadd.f32 %v1047, %v1207
      %v1209 = vpop.f32.mrf.mxu0
      %v1210 = vpop.f32.mrf.mxu0
      %v1211 = vadd.f32 %v1050, %v1210
      %v1212 = vpop.f32.mrf.mxu0
      %1213 = vmatprep.mubr.bf16.mxu0 %v679
      %1214 = vmatmul.mubr.bf16.gmra.mxu0 %v678
      %v1215 = vpop.f32.mrf.mxu0
      %v1216 = vadd.f32 %v1055, %v1215
      %v1217 = vpop.f32.mrf.mxu0
      %v1218 = vpop.f32.mrf.mxu0
      %v1219 = vadd.f32 %v1058, %v1218
      %v1220 = vpop.f32.mrf.mxu0
      %1221 = vmatprep.mubr.bf16.mxu0 %v683
      %1222 = vmatmul.mubr.bf16.gmra.mxu0 %v682
      %v1223 = vpop.f32.mrf.mxu0
      %v1224 = vadd.f32 %v1063, %v1223
      %v1225 = vpop.f32.mrf.mxu0
      %v1226 = vpop.f32.mrf.mxu0
      %v1227 = vadd.f32 %v1066, %v1226
      %v1228 = vpop.f32.mrf.mxu0
      %1229 = vmatprep.mubr.bf16.mxu0 %v687
      %1230 = vmatmul.mubr.bf16.gmra.mxu0 %v686
      %v1231 = vpop.f32.mrf.mxu0
      %v1232 = vadd.f32 %v1071, %v1231
      %v1233 = vpop.f32.mrf.mxu0
      %v1234 = vpop.f32.mrf.mxu0
      %v1235 = vadd.f32 %v1074, %v1234
      %v1236 = vpop.f32.mrf.mxu0
      %1237 = vmatprep.mubr.bf16.mxu0 %v691
      %1238 = vmatmul.mubr.bf16.gmra.mxu0 %v690
      %v1239 = vpop.f32.mrf.mxu0
      %v1240 = vadd.f32 %v1079, %v1239
      %v1241 = vpop.f32.mrf.mxu0
      %v1242 = vpop.f32.mrf.mxu0
      %v1243 = vadd.f32 %v1082, %v1242
      %v1244 = vpop.f32.mrf.mxu0
      %1245 = vmatprep.mubr.bf16.mxu0 %v695
      %1246 = vmatmul.mubr.bf16.gmra.mxu0 %v694
      %v1247 = vpop.f32.mrf.mxu0
      %v1248 = vadd.f32 %v1087, %v1247
      %v1249 = vpop.f32.mrf.mxu0
      %v1250 = vpop.f32.mrf.mxu0
      %v1251 = vadd.f32 %v1090, %v1250
      %v1252 = vpop.f32.mrf.mxu0
      %1253 = vmatprep.mubr.bf16.mxu0 %v699
      %1254 = vmatmul.mubr.bf16.gmra.mxu0 %v698
      %v1255 = vpop.f32.mrf.mxu0
      %v1256 = vadd.f32 %v1095, %v1255
      %v1257 = vpop.f32.mrf.mxu0
      %v1258 = vpop.f32.mrf.mxu0
      %v1259 = vadd.f32 %v1098, %v1258
      %v1260 = vpop.f32.mrf.mxu0
      %1261 = vmatprep.mubr.bf16.mxu0 %v703
      %1262 = vmatmul.mubr.bf16.gmra.mxu0 %v702
      %v1263 = vpop.f32.mrf.mxu0
      %v1264 = vadd.f32 %v1103, %v1263
      %v1265 = vpop.f32.mrf.mxu0
      %v1266 = vpop.f32.mrf.mxu0
      %v1267 = vadd.f32 %v1106, %v1266
      %v1268 = vpop.f32.mrf.mxu0
      %1269 = vmatprep.mubr.bf16.mxu0 %v707
      %1270 = vmatmul.mubr.bf16.gmra.mxu0 %v706
      %v1271 = vpop.f32.mrf.mxu0
      %v1272 = vadd.f32 %v1111, %v1271
      %v1273 = vpop.f32.mrf.mxu0
      %v1274 = vpop.f32.mrf.mxu0
      %v1275 = vadd.f32 %v1114, %v1274
      %v1276 = vpop.f32.mrf.mxu0
      %1277 = vmatprep.mubr.bf16.mxu0 %v711
      %1278 = vmatmul.mubr.bf16.gmra.mxu0 %v710
      %v1279 = vpop.f32.mrf.mxu0
      %v1280 = vadd.f32 %v1119, %v1279
      %v1281 = vpop.f32.mrf.mxu0
      %v1282 = vpop.f32.mrf.mxu0
      %v1283 = vadd.f32 %v1122, %v1282
      %v1284 = vpop.f32.mrf.mxu0
      %1285 = vmatprep.mubr.bf16.mxu0 %v715
      %1286 = vmatmul.mubr.bf16.gmra.mxu0 %v714
      %v1287 = vpop.f32.mrf.mxu0
      %v1288 = vadd.f32 %v1127, %v1287
      %v1289 = vpop.f32.mrf.mxu0
      %v1290 = vpop.f32.mrf.mxu0
      %v1291 = vadd.f32 %v1130, %v1290
      %v1292 = vpop.f32.mrf.mxu0
      %1293 = vdwg.mxu0
      %v1294 = vld [vmem:[%s251] sm:$0xff]
      %v1295 = vld [vmem:[%s251 + $0x8] sm:$0xff]
      %v1296 = vld [vmem:[%s251 + $0x10] sm:$0xff]
      %v1297 = vld [vmem:[%s251 + $0x18] sm:$0xff]
      %v1298 = vld [vmem:[%s251 + $0x20] sm:$0xff]
      %v1299 = vld [vmem:[%s251 + $0x28] sm:$0xff]
      %v1300 = vld [vmem:[%s251 + $0x30] sm:$0xff]
      %v1301 = vld [vmem:[%s251 + $0x38] sm:$0xff]
      %v1302 = vld [vmem:[%s251 + $0x40] sm:$0xff]
      %v1303 = vld [vmem:[%s251 + $0x48] sm:$0xff]
      %v1304 = vld [vmem:[%s251 + $0x50] sm:$0xff]
      %v1305 = vld [vmem:[%s251 + $0x58] sm:$0xff]
      %v1306 = vld [vmem:[%s251 + $0x60] sm:$0xff]
      %v1307 = vld [vmem:[%s251 + $0x68] sm:$0xff]
      %v1308 = vld [vmem:[%s251 + $0x70] sm:$0xff]
      %v1309 = vld [vmem:[%s251 + $0x78] sm:$0xff]
      %v1310 = vld [vmem:[%s251 + $0x80] sm:$0xff]
      %v1311 = vld [vmem:[%s251 + $0x88] sm:$0xff]
      %v1312 = vld [vmem:[%s251 + $0x90] sm:$0xff]
      %v1313 = vld [vmem:[%s251 + $0x98] sm:$0xff]
      %v1314 = vld [vmem:[%s251 + $0xa0] sm:$0xff]
      %v1315 = vld [vmem:[%s251 + $0xa8] sm:$0xff]
      %v1316 = vld [vmem:[%s251 + $0xb0] sm:$0xff]
      %v1317 = vld [vmem:[%s251 + $0xb8] sm:$0xff]
      %v1318 = vld [vmem:[%s251 + $0xc0] sm:$0xff]
      %v1319 = vld [vmem:[%s251 + $0xc8] sm:$0xff]
      %v1320 = vld [vmem:[%s251 + $0xd0] sm:$0xff]
      %v1321 = vld [vmem:[%s251 + $0xd8] sm:$0xff]
      %v1322 = vld [vmem:[%s251 + $0xe0] sm:$0xff]
      %v1323 = vld [vmem:[%s251 + $0xe8] sm:$0xff]
      %v1324 = vld [vmem:[%s251 + $0xf0] sm:$0xff]
      %v1325 = vld [vmem:[%s251 + $0xf8] sm:$0xff]
      %1327 = vset.pattern.permute.xlu0 0
      %1328 = vperm.xlu0 %1327, %v1294
      %v1329 = vpop.permute.xlu0 %1328
      %1332 = vset.pattern.permute.xlu0 0
      %1333 = vperm.xlu0 %1332, %v1295
      %v1334 = vpop.permute.xlu0 %1333
      %1337 = vset.pattern.permute.xlu0 0
      %1338 = vperm.xlu0 %1337, %v1296
      %v1339 = vpop.permute.xlu0 %1338
      %1342 = vset.pattern.permute.xlu0 0
      %1343 = vperm.xlu0 %1342, %v1297
      %v1344 = vpop.permute.xlu0 %1343
      %1347 = vset.pattern.permute.xlu0 0
      %1348 = vperm.xlu0 %1347, %v1298
      %v1349 = vpop.permute.xlu0 %1348
      %1352 = vset.pattern.permute.xlu0 0
      %1353 = vperm.xlu0 %1352, %v1299
      %v1354 = vpop.permute.xlu0 %1353
      %1357 = vset.pattern.permute.xlu0 0
      %1358 = vperm.xlu0 %1357, %v1300
      %v1359 = vpop.permute.xlu0 %1358
      %1362 = vset.pattern.permute.xlu0 0
      %1363 = vperm.xlu0 %1362, %v1301
      %v1364 = vpop.permute.xlu0 %1363
      %1367 = vset.pattern.permute.xlu0 0
      %1368 = vperm.xlu0 %1367, %v1302
      %v1369 = vpop.permute.xlu0 %1368
      %1372 = vset.pattern.permute.xlu0 0
      %1373 = vperm.xlu0 %1372, %v1303
      %v1374 = vpop.permute.xlu0 %1373
      %1377 = vset.pattern.permute.xlu0 0
      %1378 = vperm.xlu0 %1377, %v1304
      %v1379 = vpop.permute.xlu0 %1378
      %1382 = vset.pattern.permute.xlu0 0
      %1383 = vperm.xlu0 %1382, %v1305
      %v1384 = vpop.permute.xlu0 %1383
      %1387 = vset.pattern.permute.xlu0 0
      %1388 = vperm.xlu0 %1387, %v1306
      %v1389 = vpop.permute.xlu0 %1388
      %1392 = vset.pattern.permute.xlu0 0
      %1393 = vperm.xlu0 %1392, %v1307
      %v1394 = vpop.permute.xlu0 %1393
      %1397 = vset.pattern.permute.xlu0 0
      %1398 = vperm.xlu0 %1397, %v1308
      %v1399 = vpop.permute.xlu0 %1398
      %1402 = vset.pattern.permute.xlu0 0
      %1403 = vperm.xlu0 %1402, %v1309
      %v1404 = vpop.permute.xlu0 %1403
      %1407 = vset.pattern.permute.xlu0 0
      %1408 = vperm.xlu0 %1407, %v1310
      %v1409 = vpop.permute.xlu0 %1408
      %1412 = vset.pattern.permute.xlu0 0
      %1413 = vperm.xlu0 %1412, %v1311
      %v1414 = vpop.permute.xlu0 %1413
      %1417 = vset.pattern.permute.xlu0 0
      %1418 = vperm.xlu0 %1417, %v1312
      %v1419 = vpop.permute.xlu0 %1418
      %1422 = vset.pattern.permute.xlu0 0
      %1423 = vperm.xlu0 %1422, %v1313
      %v1424 = vpop.permute.xlu0 %1423
      %1427 = vset.pattern.permute.xlu0 0
      %1428 = vperm.xlu0 %1427, %v1314
      %v1429 = vpop.permute.xlu0 %1428
      %1432 = vset.pattern.permute.xlu0 0
      %1433 = vperm.xlu0 %1432, %v1315
      %v1434 = vpop.permute.xlu0 %1433
      %1437 = vset.pattern.permute.xlu0 0
      %1438 = vperm.xlu0 %1437, %v1316
      %v1439 = vpop.permute.xlu0 %1438
      %1442 = vset.pattern.permute.xlu0 0
      %1443 = vperm.xlu0 %1442, %v1317
      %v1444 = vpop.permute.xlu0 %1443
      %1447 = vset.pattern.permute.xlu0 0
      %1448 = vperm.xlu0 %1447, %v1318
      %v1449 = vpop.permute.xlu0 %1448
      %1452 = vset.pattern.permute.xlu0 0
      %1453 = vperm.xlu0 %1452, %v1319
      %v1454 = vpop.permute.xlu0 %1453
      %1457 = vset.pattern.permute.xlu0 0
      %1458 = vperm.xlu0 %1457, %v1320
      %v1459 = vpop.permute.xlu0 %1458
      %1462 = vset.pattern.permute.xlu0 0
      %1463 = vperm.xlu0 %1462, %v1321
      %v1464 = vpop.permute.xlu0 %1463
      %1467 = vset.pattern.permute.xlu0 0
      %1468 = vperm.xlu0 %1467, %v1322
      %v1469 = vpop.permute.xlu0 %1468
      %1472 = vset.pattern.permute.xlu0 0
      %1473 = vperm.xlu0 %1472, %v1323
      %v1474 = vpop.permute.xlu0 %1473
      %1477 = vset.pattern.permute.xlu0 0
      %1478 = vperm.xlu0 %1477, %v1324
      %v1479 = vpop.permute.xlu0 %1478
      %1482 = vset.pattern.permute.xlu0 0
      %1483 = vperm.xlu0 %1482, %v1325
      %v1484 = vpop.permute.xlu0 %1483
      %v1486 = vmul.f32 %v1329, %v1168
      %v1487 = vmul.f32 %v1334, %v1171
      %v1488 = vmul.f32 %v1339, %v1176
      %v1489 = vmul.f32 %v1344, %v1179
      %v1490 = vmul.f32 %v1349, %v1184
      %v1491 = vmul.f32 %v1354, %v1187
      %v1492 = vmul.f32 %v1359, %v1192
      %v1493 = vmul.f32 %v1364, %v1195
      %v1494 = vmul.f32 %v1369, %v1200
      %v1495 = vmul.f32 %v1374, %v1203
      %v1496 = vmul.f32 %v1379, %v1208
      %v1497 = vmul.f32 %v1384, %v1211
      %v1498 = vmul.f32 %v1389, %v1216
      %v1499 = vmul.f32 %v1394, %v1219
      %v1500 = vmul.f32 %v1399, %v1224
      %v1501 = vmul.f32 %v1404, %v1227
      %v1502 = vmul.f32 %v1409, %v1232
      %v1503 = vmul.f32 %v1414, %v1235
      %v1504 = vmul.f32 %v1419, %v1240
      %v1505 = vmul.f32 %v1424, %v1243
      %v1506 = vmul.f32 %v1429, %v1248
      %v1507 = vmul.f32 %v1434, %v1251
      %v1508 = vmul.f32 %v1439, %v1256
      %v1509 = vmul.f32 %v1444, %v1259
      %v1510 = vmul.f32 %v1449, %v1264
      %v1511 = vmul.f32 %v1454, %v1267
      %v1512 = vmul.f32 %v1459, %v1272
      %v1513 = vmul.f32 %v1464, %v1275
      %v1514 = vmul.f32 %v1469, %v1280
      %v1515 = vmul.f32 %v1474, %v1283
      %v1516 = vmul.f32 %v1479, %v1288
      %v1517 = vmul.f32 %v1484, %v1291
      %v1518 = vld [vmem:[%s3] sm:$0x1]
      %v1520 = vlaneseq
      %v1521 = vshrl.u32 %v1520, 7
      %v1522 = vsub.s32 0, %v1521
      %v1523 = vrot.slane %v1518, %v1522
      %v1525 = vadd.f32 %v1486, %v1523
      %v1526 = vadd.f32 %v1487, %v1523
      %v1527 = vadd.f32 %v1488, %v1523
      %v1528 = vadd.f32 %v1489, %v1523
      %v1529 = vadd.f32 %v1490, %v1523
      %v1530 = vadd.f32 %v1491, %v1523
      %v1531 = vadd.f32 %v1492, %v1523
      %v1532 = vadd.f32 %v1493, %v1523
      %v1533 = vadd.f32 %v1494, %v1523
      %v1534 = vadd.f32 %v1495, %v1523
      %v1535 = vadd.f32 %v1496, %v1523
      %v1536 = vadd.f32 %v1497, %v1523
      %v1537 = vadd.f32 %v1498, %v1523
      %v1538 = vadd.f32 %v1499, %v1523
      %v1539 = vadd.f32 %v1500, %v1523
      %v1540 = vadd.f32 %v1501, %v1523
      %v1541 = vadd.f32 %v1502, %v1523
      %v1542 = vadd.f32 %v1503, %v1523
      %v1543 = vadd.f32 %v1504, %v1523
      %v1544 = vadd.f32 %v1505, %v1523
      %v1545 = vadd.f32 %v1506, %v1523
      %v1546 = vadd.f32 %v1507, %v1523
      %v1547 = vadd.f32 %v1508, %v1523
      %v1548 = vadd.f32 %v1509, %v1523
      %v1549 = vadd.f32 %v1510, %v1523
      %v1550 = vadd.f32 %v1511, %v1523
      %v1551 = vadd.f32 %v1512, %v1523
      %v1552 = vadd.f32 %v1513, %v1523
      %v1553 = vadd.f32 %v1514, %v1523
      %v1554 = vadd.f32 %v1515, %v1523
      %v1555 = vadd.f32 %v1516, %v1523
      %v1556 = vadd.f32 %v1517, %v1523
      %v1557 = vmax.f32 %v1525, 0.0
      %v1558 = vmax.f32 %v1526, 0.0
      %v1559 = vmax.f32 %v1527, 0.0
      %v1560 = vmax.f32 %v1528, 0.0
      %v1561 = vmax.f32 %v1529, 0.0
      %v1562 = vmax.f32 %v1530, 0.0
      %v1563 = vmax.f32 %v1531, 0.0
      %v1564 = vmax.f32 %v1532, 0.0
      %v1565 = vmax.f32 %v1533, 0.0
      %v1566 = vmax.f32 %v1534, 0.0
      %v1567 = vmax.f32 %v1535, 0.0
      %v1568 = vmax.f32 %v1536, 0.0
      %v1569 = vmax.f32 %v1537, 0.0
      %v1570 = vmax.f32 %v1538, 0.0
      %v1571 = vmax.f32 %v1539, 0.0
      %v1572 = vmax.f32 %v1540, 0.0
      %v1573 = vmax.f32 %v1541, 0.0
      %v1574 = vmax.f32 %v1542, 0.0
      %v1575 = vmax.f32 %v1543, 0.0
      %v1576 = vmax.f32 %v1544, 0.0
      %v1577 = vmax.f32 %v1545, 0.0
      %v1578 = vmax.f32 %v1546, 0.0
      %v1579 = vmax.f32 %v1547, 0.0
      %v1580 = vmax.f32 %v1548, 0.0
      %v1581 = vmax.f32 %v1549, 0.0
      %v1582 = vmax.f32 %v1550, 0.0
      %v1583 = vmax.f32 %v1551, 0.0
      %v1584 = vmax.f32 %v1552, 0.0
      %v1585 = vmax.f32 %v1553, 0.0
      %v1586 = vmax.f32 %v1554, 0.0
      %v1587 = vmax.f32 %v1555, 0.0
      %v1588 = vmax.f32 %v1556, 0.0
      %1589 = vst [vmem:[%s257] sm:$0xff] %v1557
      %1590 = vst [vmem:[%s257 + $0x8] sm:$0xff] %v1558
      %1591 = vst [vmem:[%s257 + $0x10] sm:$0xff] %v1559
      %1592 = vst [vmem:[%s257 + $0x18] sm:$0xff] %v1560
      %1593 = vst [vmem:[%s257 + $0x20] sm:$0xff] %v1561
      %1594 = vst [vmem:[%s257 + $0x28] sm:$0xff] %v1562
      %1595 = vst [vmem:[%s257 + $0x30] sm:$0xff] %v1563
      %1596 = vst [vmem:[%s257 + $0x38] sm:$0xff] %v1564
      %1597 = vst [vmem:[%s257 + $0x40] sm:$0xff] %v1565
      %1598 = vst [vmem:[%s257 + $0x48] sm:$0xff] %v1566
      %1599 = vst [vmem:[%s257 + $0x50] sm:$0xff] %v1567
      %1600 = vst [vmem:[%s257 + $0x58] sm:$0xff] %v1568
      %1601 = vst [vmem:[%s257 + $0x60] sm:$0xff] %v1569
      %1602 = vst [vmem:[%s257 + $0x68] sm:$0xff] %v1570
      %1603 = vst [vmem:[%s257 + $0x70] sm:$0xff] %v1571
      %1604 = vst [vmem:[%s257 + $0x78] sm:$0xff] %v1572
      %1605 = vst [vmem:[%s257 + $0x80] sm:$0xff] %v1573
      %1606 = vst [vmem:[%s257 + $0x88] sm:$0xff] %v1574
      %1607 = vst [vmem:[%s257 + $0x90] sm:$0xff] %v1575
      %1608 = vst [vmem:[%s257 + $0x98] sm:$0xff] %v1576
      %1609 = vst [vmem:[%s257 + $0xa0] sm:$0xff] %v1577
      %1610 = vst [vmem:[%s257 + $0xa8] sm:$0xff] %v1578
      %1611 = vst [vmem:[%s257 + $0xb0] sm:$0xff] %v1579
      %1612 = vst [vmem:[%s257 + $0xb8] sm:$0xff] %v1580
      %1613 = vst [vmem:[%s257 + $0xc0] sm:$0xff] %v1581
      %1614 = vst [vmem:[%s257 + $0xc8] sm:$0xff] %v1582
      %1615 = vst [vmem:[%s257 + $0xd0] sm:$0xff] %v1583
      %1616 = vst [vmem:[%s257 + $0xd8] sm:$0xff] %v1584
      %1617 = vst [vmem:[%s257 + $0xe0] sm:$0xff] %v1585
      %1618 = vst [vmem:[%s257 + $0xe8] sm:$0xff] %v1586
      %1619 = vst [vmem:[%s257 + $0xf0] sm:$0xff] %v1587
      %1620 = vst [vmem:[%s257 + $0xf8] sm:$0xff] %v1588
      %v1621 = vadd.f32 %v1557, %v1558
      %v1622 = vadd.f32 %v1621, %v1559
      %v1623 = vadd.f32 %v1622, %v1560
      %v1624 = vadd.f32 %v1623, %v1561
      %v1625 = vadd.f32 %v1624, %v1562
      %v1626 = vadd.f32 %v1625, %v1563
      %v1627 = vadd.f32 %v1626, %v1564
      %v1628 = vadd.f32 %v1627, %v1565
      %v1629 = vadd.f32 %v1628, %v1566
      %v1630 = vadd.f32 %v1629, %v1567
      %v1631 = vadd.f32 %v1630, %v1568
      %v1632 = vadd.f32 %v1631, %v1569
      %v1633 = vadd.f32 %v1632, %v1570
      %v1634 = vadd.f32 %v1633, %v1571
      %v1635 = vadd.f32 %v1634, %v1572
      %v1636 = vadd.f32 %v1635, %v1573
      %v1637 = vadd.f32 %v1636, %v1574
      %v1638 = vadd.f32 %v1637, %v1575
      %v1639 = vadd.f32 %v1638, %v1576
      %v1640 = vadd.f32 %v1639, %v1577
      %v1641 = vadd.f32 %v1640, %v1578
      %v1642 = vadd.f32 %v1641, %v1579
      %v1643 = vadd.f32 %v1642, %v1580
      %v1644 = vadd.f32 %v1643, %v1581
      %v1645 = vadd.f32 %v1644, %v1582
      %v1646 = vadd.f32 %v1645, %v1583
      %v1647 = vadd.f32 %v1646, %v1584
      %v1648 = vadd.f32 %v1647, %v1585
      %v1649 = vadd.f32 %v1648, %v1586
      %v1650 = vadd.f32 %v1649, %v1587
      %v1651 = vadd.f32 %v1650, %v1588
      %v1652 = vrot.slane %v1651, 4
      %v1653 = vadd.f32 %v1651, %v1652
      %v1654 = vrot.slane %v1653, 2
      %v1655 = vadd.f32 %v1653, %v1654
      %v1656 = vrot.slane %v1655, 1
      %v1657 = vadd.f32 %v1655, %v1656
      %1658 = vst [vmem:[%s261] sm:$0x1] %v1657
      %s1659 = smul.u32 32, %s17
      %p1660 = scmp.lt.s32.totalorder %s1659, 63
      %s1661 = scalar_select %p1660, %s1659, 63
      %s1662 = smul.addr %s1661, 8
      %s1663 = scalar_lea.vmem %s4, %s1662
      %p1664 = scmp.lt.s32.totalorder %s17, 1
      %s1665 = scalar_select %p1664, %s17, 1
      %s1666 = scalar_lea.vmem %s5, %s1665
      // Predicated region
      $region37: #{gnn_encode.3} parent=35 // pred_check
        %p1667 = pneg %p129
      $region38: #{gnn_encode.3} parent=35 // pred_check_branch
        %1669 = sbr.rel (%p1667) target = $region40
      $region39: #{gnn_encode.3} parent=35 // pred_region
        %s1670 = smul.u32 32, %s17
      $region40: #{gnn_encode.3} parent=35 // pred_fallthru
        _
      // Predicated region
      $region41: #{gnn_encode.3} parent=35 // pred_check
        %p1671 = pneg %p155
      $region42: #{gnn_encode.3} parent=35 // pred_check_branch
        %1673 = sbr.rel (%p1671) target = $region44
      $region43: #{gnn_encode.3} parent=35 // pred_region
        _
      $region44: #{gnn_encode.3} parent=35 // pred_fallthru
        _
    $region36: #{gnn_encode.3} parent=5 // pred_fallthru
      _
    %p1674 = scmp.le.s32.totalorder 2, %s12
    // Predicated region
    $region45: #{gnn_encode.3} parent=5 // pred_check
      %p1675 = pneg %p1674
    $region46: #{gnn_encode.3} parent=5 // pred_check_branch
      %1677 = sbr.rel (%p1675) target = $region48
    $region47: #{gnn_encode.3} parent=5 // pred_region
      %s1678 = ssub.s32 %s12, 2
      // Predicated region
      $region49: #{gnn_encode.3} parent=47 // pred_check
        %p1679 = pneg %p135
      $region50: #{gnn_encode.3} parent=47 // pred_check_branch
        %1681 = sbr.rel (%p1679) target = $region52
      $region51: #{gnn_encode.3} parent=47 // pred_region
        %s1682 = smul.u32 32, %s18
        %p1683 = scmp.lt.s32.totalorder %s1682, 63
        %s1684 = scalar_select %p1683, %s1682, 63
        %s1685 = smul.addr %s1684, 8
        %s1686 = scalar_lea.vmem %s4, %s1685
      $region52: #{gnn_encode.3} parent=47 // pred_fallthru
        _
      // Predicated region
      $region53: #{gnn_encode.3} parent=47 // pred_check
        %p1687 = pneg %p161
      $region54: #{gnn_encode.3} parent=47 // pred_check_branch
        %1689 = sbr.rel (%p1687) target = $region56
      $region55: #{gnn_encode.3} parent=47 // pred_region
        %p1690 = scmp.lt.s32.totalorder %s18, 1
        %s1691 = scalar_select %p1690, %s18, 1
        %s1692 = scalar_lea.vmem %s5, %s1691
      $region56: #{gnn_encode.3} parent=47 // pred_fallthru
        _
    $region48: #{gnn_encode.3} parent=5 // pred_fallthru
      _
  $region6: #{gnn_encode.3} parent=0 // loop_footer
    %s16 = sadd.s32 1, %s12
  $region7: #{gnn_encode.3} parent=0 // loop_footer_branch
    %11 = sbr.rel target = $region3
  $region8: #{gnn_encode.3} parent=0 // loop_exit
    _

</llo_original>
